<compile_context>
chip_gen: v5e
topology: v5e:2x2
jax: 0.10.0
libtpu: 0.0.40
codegen_flags: <defaults>
</compile_context>

<pallas_src>
import jax
import jax.numpy as jnp
import numpy as np
from jax.experimental import pallas as pl
from jax.experimental.pallas import tpu as pltpu


# ---------------------------------------------------------------------------
# Pallas kernel: 4 lane-dense matmuls, f32 accumulate, bias+ReLU in f32.
# ---------------------------------------------------------------------------
def actor_critic_kernel(x_ref, t1_ref, b1_ref, t2_ref, b2_ref,
                        wfc_ref, bfc_ref, wh_ref, bh_ref, out_ref):
    x = x_ref[...].astype(jnp.bfloat16)                                    # (TB, 256)
    h = jnp.dot(x, t1_ref[...], preferred_element_type=jnp.float32)       # (TB, 576)
    h = jnp.maximum(h + b1_ref[...], 0.0).astype(jnp.bfloat16)
    h = jnp.dot(h, t2_ref[...], preferred_element_type=jnp.float32)       # (TB, 512)
    h = jnp.maximum(h + b2_ref[...], 0.0).astype(jnp.bfloat16)
    h = jnp.dot(h, wfc_ref[...], preferred_element_type=jnp.float32)      # (TB, 64)
    h = jnp.maximum(h + bfc_ref[...], 0.0).astype(jnp.bfloat16)
    out_ref[...] = (jnp.dot(h, wh_ref[...], preferred_element_type=jnp.float32)
                    + bh_ref[...])                                         # (TB, 8)


# ---------------------------------------------------------------------------
# One-time parameter repacking (hoisted out of the per-call path).
# ---------------------------------------------------------------------------
def _conv2x2_toeplitz(W, hin, win, in_order):
    """Dense T s.t. x_flat @ T == valid 2x2 conv; output flat order (ho, wo, cout).

    W: (cout, cin, 2, 2).  in_order 'chw': row = c*hin*win + h*win + w (PyTorch
    flatten of the raw input); 'hwc': row = (h*win + w)*cin + c (previous conv's
    output order)."""
    W = np.asarray(W, np.float32)
    cout, cin, KH, KW = W.shape
    ho_n, wo_n = hin - KH + 1, win - KW + 1
    T = np.zeros((cin * hin * win, ho_n * wo_n * cout), np.float32)
    for ho in range(ho_n):
        for wo in range(wo_n):
            c0 = (ho * wo_n + wo) * cout
            for kh in range(KH):
                for kw in range(KW):
                    h, w = ho + kh, wo + kw
                    for c in range(cin):
                        r = ((c * hin + h) * win + w if in_order == "chw"
                             else (h * win + w) * cin + c)
                        T[r, c0:c0 + cout] = W[:, c, kh, kw]
    return T


def pack_params(params, mxu_dtype=jnp.bfloat16):
    """PyTorch-convention params -> kernel operands (block-Toeplitz convs,
    permuted fc, fused heads packed into 8 lanes).  Call once; reuse every
    forward."""
    W1, b1, W2, b2, Wfc, bfc, Wp, bp, Wv, bv = params
    t1 = jnp.asarray(_conv2x2_toeplitz(W1, 4, 4, "chw"), mxu_dtype)       # (256, 576)
    t2 = jnp.asarray(_conv2x2_toeplitz(W2, 3, 3, "hwc"), mxu_dtype)       # (576, 512)
    b1k = jnp.tile(jnp.asarray(b1, jnp.float32), 9).reshape(1, 576)       # (ho,wo,c)
    b2k = jnp.tile(jnp.asarray(b2, jnp.float32), 4).reshape(1, 512)
    # fc: PyTorch flattens conv output as (c, h, w); kernel produces (h, w, c).
    wfck = jnp.asarray(
        np.asarray(Wfc, np.float32).reshape(64, 128, 2, 2)
        .transpose(0, 2, 3, 1).reshape(64, 512).T, mxu_dtype)             # (512, 64)
    bfck = jnp.asarray(bfc, jnp.float32).reshape(1, 64)
    # Fused heads, packed to 8 lanes: cols 0-3 policy, col 4 value, 5-7 zero.
    wh = np.zeros((64, 8), np.float32)
    wh[:, 0:4] = np.asarray(Wp, np.float32).T
    wh[:, 4:5] = np.asarray(Wv, np.float32).T
    bh = np.zeros((1, 8), np.float32)
    bh[0, 0:4] = np.asarray(bp, np.float32)
    bh[0, 4] = float(np.asarray(bv, np.float32)[0])
    return (t1, b1k, t2, b2k, wfck, bfck,
            jnp.asarray(wh, mxu_dtype), jnp.asarray(bh, jnp.float32))


def _round_up(a, m):
    return ((a + m - 1) // m) * m


# ---------------------------------------------------------------------------
# Forward wrapper: batch grid (>= 2 steps), resident weights, 8-lane output.
# ---------------------------------------------------------------------------
def actor_critic_forward(x_nchw, packed, *, block_b=2048):
    """x_nchw: (B, 16, 4, 4) float32 or bfloat16 (PyTorch layout).
    Returns (policy (B,4), value (B,1)).

    block_b=2048 keeps the per-tile working set ~20 MiB -- safe on v7x's
    64 MiB/TC VMEM; do NOT raise to 4096 on v7x (spill risk)."""
    t1, b1k, t2, b2k, wfck, bfck, wh, bh = packed
    B = x_nchw.shape[0]
    # Free reshape, no transpose, and NO forced f32 cast (bf16 inputs pass
    # straight through; the kernel casts to bf16 only if needed).
    x2d = x_nchw.reshape(B, 256)

    # Even split into >= 2 grid steps (engages both TCs on v7x; harmless on
    # single-TC v5e/v6e).  Tile is a multiple of 16 for packed bf16 vregs.
    nsteps = max(2, -(-B // block_b))
    tb = max(16, _round_up(-(-B // nsteps), 16))
    b_pad = nsteps * tb
    if b_pad != B:
        x2d = jnp.pad(x2d, ((0, b_pad - B), (0, 0)))      # pad rows, sliced off later

    weights = (t1, b1k, t2, b2k, wfck, bfck, wh, bh)
    resident = lambda a: pl.BlockSpec(a.shape, lambda i: (0, 0))

    flops = 2 * b_pad * (256 * 576 + 576 * 512 + 512 * 64 + 64 * 8)
    bytes_accessed = (b_pad * 256 * x2d.dtype.itemsize     # input (actual dtype)
                      + b_pad * 8 * 4                      # 8-lane f32 output
                      + sum(int(np.prod(w.shape)) * w.dtype.itemsize for w in weights))

    out = pl.pallas_call(
        actor_critic_kernel,
        out_shape=jax.ShapeDtypeStruct((b_pad, 8), jnp.float32),
        grid=(nsteps,),
        in_specs=[pl.BlockSpec((tb, 256), lambda i: (i, 0))]
                 + [resident(w) for w in weights],
        out_specs=pl.BlockSpec((tb, 8), lambda i: (i, 0)),
        compiler_params=pltpu.CompilerParams(
            dimension_semantics=("parallel",),
            vmem_limit_bytes=48 * 1024 * 1024),
        cost_estimate=pl.CostEstimate(flops=flops, transcendentals=0,
                                      bytes_accessed=bytes_accessed),
    )(x2d, *weights)
    return out[:B, 0:4], out[:B, 4:5]


# ---------------------------------------------------------------------------
# Deterministic PyTorch-convention init; value bias = 1.0
# ---------------------------------------------------------------------------
def init_params(key):
    ks = jax.random.split(key, 9)

    def u(k, shape, fan_in):
        bound = 1.0 / jnp.sqrt(jnp.float32(fan_in))
        return jax.random.uniform(k, shape, jnp.float32, -bound, bound)

    W1 = u(ks[0], (64, 16, 2, 2), 16 * 4)
    b1 = u(ks[1], (64,), 16 * 4)
    W2 = u(ks[2], (128, 64, 2, 2), 64 * 4)
    b2 = u(ks[3], (128,), 64 * 4)
    Wfc = u(ks[4], (64, 512), 512)
    bfc = u(ks[5], (64,), 512)
    Wp = u(ks[6], (4, 64), 64)
    bp = u(ks[7], (4,), 64)
    Wv = u(ks[8], (1, 64), 64)
    bv = jnp.ones((1,), jnp.float32)          # nn.init.constant_(self.value.bias, 1.0)
    return (W1, b1, W2, b2, Wfc, bfc, Wp, bp, Wv, bv)


# ---------------------------------------------------------------------------
# Plain-JAX reference reproducing the PyTorch NCHW math (for verification)
# ---------------------------------------------------------------------------
def torch_reference(x_nchw, params):
    W1, b1, W2, b2, Wfc, bfc, Wp, bp, Wv, bv = params

    def conv(x, W, b):
        B, C, H, Wd = x.shape
        Ho, Wo = H - 1, Wd - 1
        out = jnp.zeros((B, W.shape[0], Ho, Wo), jnp.float32)
        for i in range(2):
            for j in range(2):
                out = out + jnp.einsum('bchw,oc->bohw',
                                       x[:, :, i:i + Ho, j:j + Wo], W[:, :, i, j])
        return out + b[None, :, None, None]

    h = jax.nn.relu(conv(x_nchw, W1, b1))
    h = jax.nn.relu(conv(h, W2, b2))
    f = h.reshape(x_nchw.shape[0], -1)
    hh = jax.nn.relu(f @ Wfc.T + bfc)
    return hh @ Wp.T + bp, hh @ Wv.T + bv


if __name__ == "__main__":
    key = jax.random.PRNGKey(0)
    pkey, xkey = jax.random.split(key)
    params = init_params(pkey)
    packed = pack_params(params)          # one-time repacking, off the hot path

    # fc expects 128*2*2 => two valid 2x2 convs => input spatial must be 4x4.
    x = jax.random.normal(xkey, (2, 16, 4, 4), jnp.float32)   # NCHW, batch=2

    fwd = jax.jit(actor_critic_forward)
    pol, val = fwd(x, packed)
    jax.block_until_ready((pol, val))

    pol_ref, val_ref = torch_reference(x, params)
    assert pol.shape == (2, 4) and val.shape == (2, 1)
    # bf16 MXU operands with f32 accumulation -> bf16-level comparison tolerance.
    assert jnp.allclose(pol, pol_ref, atol=2e-2, rtol=2e-2), \
        float(jnp.max(jnp.abs(pol - pol_ref)))
    assert jnp.allclose(val, val_ref, atol=2e-2, rtol=2e-2), \
        float(jnp.max(jnp.abs(val - val_ref)))
    print("KERNEL_OK")
</pallas_src>

<mosaic_0001>
module attributes {stable_mosaic.version = 11 : i64} {
  func.func @actor_critic_kernel(%arg0: i32, %arg1: memref<16x256xf32, #tpu.memory_space<vmem>>, %arg2: memref<256x576xbf16, #tpu.memory_space<vmem>>, %arg3: memref<1x576xf32, #tpu.memory_space<vmem>>, %arg4: memref<576x512xbf16, #tpu.memory_space<vmem>>, %arg5: memref<1x512xf32, #tpu.memory_space<vmem>>, %arg6: memref<512x64xbf16, #tpu.memory_space<vmem>>, %arg7: memref<1x64xf32, #tpu.memory_space<vmem>>, %arg8: memref<64x8xbf16, #tpu.memory_space<vmem>>, %arg9: memref<1x8xf32, #tpu.memory_space<vmem>>, %arg10: memref<16x8xf32, #tpu.memory_space<vmem>>) attributes {dimension_semantics = [#tpu.dimension_semantics<parallel>], iteration_bounds = array<i64: 2>, scalar_prefetch = 0 : i64, scratch_operands = 0 : i64, tpu.core_type = #tpu.core_type<tc>, window_params = [{transform_indices = @transform_0, window_bounds = array<i64: 16, 256>}, {pipeline_mode = #tpu.pipeline_mode<synchronous>, transform_indices = @transform_1, window_bounds = array<i64: 256, 576>}, {pipeline_mode = #tpu.pipeline_mode<synchronous>, transform_indices = @transform_2, window_bounds = array<i64: 1, 576>}, {pipeline_mode = #tpu.pipeline_mode<synchronous>, transform_indices = @transform_3, window_bounds = array<i64: 576, 512>}, {pipeline_mode = #tpu.pipeline_mode<synchronous>, transform_indices = @transform_4, window_bounds = array<i64: 1, 512>}, {pipeline_mode = #tpu.pipeline_mode<synchronous>, transform_indices = @transform_5, window_bounds = array<i64: 512, 64>}, {pipeline_mode = #tpu.pipeline_mode<synchronous>, transform_indices = @transform_6, window_bounds = array<i64: 1, 64>}, {pipeline_mode = #tpu.pipeline_mode<synchronous>, transform_indices = @transform_7, window_bounds = array<i64: 64, 8>}, {pipeline_mode = #tpu.pipeline_mode<synchronous>, transform_indices = @transform_8, window_bounds = array<i64: 1, 8>}, {transform_indices = @transform_9, window_bounds = array<i64: 16, 8>}]} {
    %c0 = arith.constant 0 : index
    %c0_0 = arith.constant 0 : index
    %0 = vector.load %arg1[%c0, %c0_0] : memref<16x256xf32, #tpu.memory_space<vmem>>, vector<16x256xf32>
    %1 = arith.truncf %0 : vector<16x256xf32> to vector<16x256xbf16>
    %c0_1 = arith.constant 0 : index
    %c0_2 = arith.constant 0 : index
    %2 = vector.load %arg2[%c0_1, %c0_2] : memref<256x576xbf16, #tpu.memory_space<vmem>>, vector<256x576xbf16>
    %cst = arith.constant dense<0.000000e+00> : vector<16x576xf32>
    %3 = tpu.matmul %1, %2, %cst {dimension_numbers = #tpu.dot_dimension_numbers<[1], [0], [0], [1], [0, 0, 1, 1], [], []>} : vector<16x256xbf16>, vector<256x576xbf16>, vector<16x576xf32> -> vector<16x576xf32>
    %c0_3 = arith.constant 0 : index
    %c0_4 = arith.constant 0 : index
    %4 = vector.load %arg3[%c0_3, %c0_4] : memref<1x576xf32, #tpu.memory_space<vmem>>, vector<1x576xf32>
    %5 = vector.broadcast %4 : vector<1x576xf32> to vector<16x576xf32>
    %6 = arith.addf %3, %5 : vector<16x576xf32>
    %cst_5 = arith.constant 0.000000e+00 : f32
    %7 = vector.broadcast %cst_5 : f32 to vector<16x576xf32>
    %8 = arith.maximumf %6, %7 : vector<16x576xf32>
    %9 = arith.truncf %8 : vector<16x576xf32> to vector<16x576xbf16>
    %c0_6 = arith.constant 0 : index
    %c0_7 = arith.constant 0 : index
    %10 = vector.load %arg4[%c0_6, %c0_7] : memref<576x512xbf16, #tpu.memory_space<vmem>>, vector<576x512xbf16>
    %cst_8 = arith.constant dense<0.000000e+00> : vector<16x512xf32>
    %11 = tpu.matmul %9, %10, %cst_8 {dimension_numbers = #tpu.dot_dimension_numbers<[1], [0], [0], [1], [0, 0, 1, 1], [], []>} : vector<16x576xbf16>, vector<576x512xbf16>, vector<16x512xf32> -> vector<16x512xf32>
    %c0_9 = arith.constant 0 : index
    %c0_10 = arith.constant 0 : index
    %12 = vector.load %arg5[%c0_9, %c0_10] : memref<1x512xf32, #tpu.memory_space<vmem>>, vector<1x512xf32>
    %13 = vector.broadcast %12 : vector<1x512xf32> to vector<16x512xf32>
    %14 = arith.addf %11, %13 : vector<16x512xf32>
    %cst_11 = arith.constant 0.000000e+00 : f32
    %15 = vector.broadcast %cst_11 : f32 to vector<16x512xf32>
    %16 = arith.maximumf %14, %15 : vector<16x512xf32>
    %17 = arith.truncf %16 : vector<16x512xf32> to vector<16x512xbf16>
    %c0_12 = arith.constant 0 : index
    %c0_13 = arith.constant 0 : index
    %18 = vector.load %arg6[%c0_12, %c0_13] : memref<512x64xbf16, #tpu.memory_space<vmem>>, vector<512x64xbf16>
    %cst_14 = arith.constant dense<0.000000e+00> : vector<16x64xf32>
    %19 = tpu.matmul %17, %18, %cst_14 {dimension_numbers = #tpu.dot_dimension_numbers<[1], [0], [0], [1], [0, 0, 1, 1], [], []>} : vector<16x512xbf16>, vector<512x64xbf16>, vector<16x64xf32> -> vector<16x64xf32>
    %c0_15 = arith.constant 0 : index
    %c0_16 = arith.constant 0 : index
    %20 = vector.load %arg7[%c0_15, %c0_16] : memref<1x64xf32, #tpu.memory_space<vmem>>, vector<1x64xf32>
    %21 = vector.broadcast %20 : vector<1x64xf32> to vector<16x64xf32>
    %22 = arith.addf %19, %21 : vector<16x64xf32>
    %cst_17 = arith.constant 0.000000e+00 : f32
    %23 = vector.broadcast %cst_17 : f32 to vector<16x64xf32>
    %24 = arith.maximumf %22, %23 : vector<16x64xf32>
    %25 = arith.truncf %24 : vector<16x64xf32> to vector<16x64xbf16>
    %c0_18 = arith.constant 0 : index
    %c0_19 = arith.constant 0 : index
    %26 = vector.load %arg8[%c0_18, %c0_19] : memref<64x8xbf16, #tpu.memory_space<vmem>>, vector<64x8xbf16>
    %cst_20 = arith.constant dense<0.000000e+00> : vector<16x8xf32>
    %27 = tpu.matmul %25, %26, %cst_20 {dimension_numbers = #tpu.dot_dimension_numbers<[1], [0], [0], [1], [0, 0, 1, 1], [], []>} : vector<16x64xbf16>, vector<64x8xbf16>, vector<16x8xf32> -> vector<16x8xf32>
    %c0_21 = arith.constant 0 : index
    %c0_22 = arith.constant 0 : index
    %28 = vector.load %arg9[%c0_21, %c0_22] : memref<1x8xf32, #tpu.memory_space<vmem>>, vector<1x8xf32>
    %29 = vector.broadcast %28 : vector<1x8xf32> to vector<16x8xf32>
    %30 = arith.addf %27, %29 : vector<16x8xf32>
    %c0_23 = arith.constant 0 : index
    %c0_24 = arith.constant 0 : index
    %31 = vector.load %arg10[%c0_23, %c0_24] : memref<16x8xf32, #tpu.memory_space<vmem>>, vector<16x8xf32>
    tpu.vector_store %arg10[%c0_23, %c0_24], %30 {strides = array<i32>} : memref<16x8xf32, #tpu.memory_space<vmem>>, vector<16x8xf32>,
    return
  }
  func.func @transform_0(%arg0: i32) -> (i32, i32) {
    %c0_i32 = arith.constant 0 : i32
    %c0_i32_0 = arith.constant 0 : i32
    return %arg0, %c0_i32 : i32, i32
  }
  func.func @transform_1(%arg0: i32) -> (i32, i32) {
    %c0_i32 = arith.constant 0 : i32
    %c0_i32_0 = arith.constant 0 : i32
    %c0_i32_1 = arith.constant 0 : i32
    return %c0_i32, %c0_i32_0 : i32, i32
  }
  func.func @transform_2(%arg0: i32) -> (i32, i32) {
    %c0_i32 = arith.constant 0 : i32
    %c0_i32_0 = arith.constant 0 : i32
    %c0_i32_1 = arith.constant 0 : i32
    return %c0_i32, %c0_i32_0 : i32, i32
  }
  func.func @transform_3(%arg0: i32) -> (i32, i32) {
    %c0_i32 = arith.constant 0 : i32
    %c0_i32_0 = arith.constant 0 : i32
    %c0_i32_1 = arith.constant 0 : i32
    return %c0_i32, %c0_i32_0 : i32, i32
  }
  func.func @transform_4(%arg0: i32) -> (i32, i32) {
    %c0_i32 = arith.constant 0 : i32
    %c0_i32_0 = arith.constant 0 : i32
    %c0_i32_1 = arith.constant 0 : i32
    return %c0_i32, %c0_i32_0 : i32, i32
  }
  func.func @transform_5(%arg0: i32) -> (i32, i32) {
    %c0_i32 = arith.constant 0 : i32
    %c0_i32_0 = arith.constant 0 : i32
    %c0_i32_1 = arith.constant 0 : i32
    return %c0_i32, %c0_i32_0 : i32, i32
  }
  func.func @transform_6(%arg0: i32) -> (i32, i32) {
    %c0_i32 = arith.constant 0 : i32
    %c0_i32_0 = arith.constant 0 : i32
    %c0_i32_1 = arith.constant 0 : i32
    return %c0_i32, %c0_i32_0 : i32, i32
  }
  func.func @transform_7(%arg0: i32) -> (i32, i32) {
    %c0_i32 = arith.constant 0 : i32
    %c0_i32_0 = arith.constant 0 : i32
    %c0_i32_1 = arith.constant 0 : i32
    return %c0_i32, %c0_i32_0 : i32, i32
  }
  func.func @transform_8(%arg0: i32) -> (i32, i32) {
    %c0_i32 = arith.constant 0 : i32
    %c0_i32_0 = arith.constant 0 : i32
    %c0_i32_1 = arith.constant 0 : i32
    return %c0_i32, %c0_i32_0 : i32, i32
  }
  func.func @transform_9(%arg0: i32) -> (i32, i32) {
    %c0_i32 = arith.constant 0 : i32
    %c0_i32_0 = arith.constant 0 : i32
    return %arg0, %c0_i32 : i32, i32
  }
}

</mosaic_0001>

<llo_original>
// kernel: actor_critic_forward.1
$region0: #{actor_critic_forward.1}
  #allocation0 [shape = 'u32[]', space=smem, size = 0x4, offset = 0x4, fixed_abs, tag = 'smem constant byte address 0x4 - core index']
  #allocation1 [shape = 'u32[72,128]{1,0:T(1,128)}', space=vmem, size = 0x9000, scoped, tag = 'internal scratch']
  %s0 = inlined_call_operand.vmem [shape: f32[32,256], index: 0, kind: input, shape index: {}]
  %s1 = inlined_call_operand.vmem [shape: bf16[256,576], index: 1, kind: input, shape index: {}]
  %s2 = inlined_call_operand.vmem [shape: f32[1,576], index: 2, kind: input, shape index: {}]
  %s3 = inlined_call_operand.vmem [shape: bf16[576,512], index: 3, kind: input, shape index: {}]
  %s4 = inlined_call_operand.vmem [shape: f32[1,512], index: 4, kind: input, shape index: {}]
  %s5 = inlined_call_operand.vmem [shape: bf16[512,64], index: 5, kind: input, shape index: {}]
  %s6 = inlined_call_operand.vmem [shape: f32[1,64], index: 6, kind: input, shape index: {}]
  %s7 = inlined_call_operand.vmem [shape: bf16[64,8], index: 7, kind: input, shape index: {}]
  %s8 = inlined_call_operand.vmem [shape: f32[1,8], index: 8, kind: input, shape index: {}]
  %s9 = inlined_call_operand.vmem [shape: f32[32,8], index: 9, kind: output, shape index: {}]
  %s10 = sld [smem:[#allocation0]]
  $region69: #{actor_critic_forward.1} parent=0
    _
  %s12 = ssub.s32 1, %s10
  %s13 = scalar_select 0, %s12, %s10
  loop: start=0, step=1, limit=4
  $region2: #{actor_critic_forward.1} parent=0 // loop_pre_header
    _
  $region3: #{actor_critic_forward.1} parent=0 // loop_header
    %s15 = sphi 0, %s19
    %p16 = scmp.ge.s32.totalorder %s15, 4
    %s25 = sphi 0, %s27
    %s28 = sphi 0, %s25
    %s29 = sphi 0, %s28
    %s45 = sphi 0, %s29
    %s49 = sphi 0, %s49
    %s51 = sphi 0, %s49
    %s52 = sphi 0, %s51
    %s66 = sphi 0, %s52
    %s70 = sphi 0, %s70
    %s72 = sphi 0, %s70
    %s73 = sphi 0, %s72
    %s87 = sphi 0, %s73
    %s91 = sphi 0, %s91
    %s93 = sphi 0, %s91
    %s94 = sphi 0, %s93
    %s108 = sphi 0, %s94
    %s112 = sphi 0, %s112
    %s114 = sphi 0, %s112
    %s115 = sphi 0, %s114
    %s129 = sphi 0, %s115
    %s133 = sphi 0, %s133
    %s135 = sphi 0, %s133
    %s136 = sphi 0, %s135
    %s150 = sphi 0, %s136
    %s154 = sphi 0, %s154
    %s156 = sphi 0, %s154
    %s157 = sphi 0, %s156
    %s171 = sphi 0, %s157
    %s175 = sphi 0, %s175
    %s177 = sphi 0, %s175
    %s178 = sphi 0, %s177
    %s192 = sphi 0, %s178
    %s196 = sphi 0, %s196
    %s198 = sphi 0, %s196
    %s199 = sphi 0, %s198
    %s213 = sphi 0, %s199
    %s219 = sphi 0, %s221
    %s222 = sphi 0, %s219
    %s223 = sphi 0, %s222
    %s239 = sphi 0, %s223
  $region4: #{actor_critic_forward.1} parent=0 // loop_header_branch
    %18 = sbr.rel (%p16) target = $region8
  $region5: #{actor_critic_forward.1} parent=0 // loop_body
    %s20 = ssub.s32 %s15, 1
    %s21 = ssub.s32 %s15, 2
    %s22 = sadd.s32 %s15, 1
    %s23 = ssub.s32 %s15, %s22
    %p24 = scmp.eq.s32.totalorder %s23, 0
    %s26 = sadd.s32 %s25, 1
    %s27 = scalar_select %p24, %s25, %s26
    %p30 = pneg %p24
    %p31 = scmp.eq.s32.totalorder %s15, 1
    %p32 = por %p30, %p31
    %p33 = scmp.ne.s32.totalorder %s25, %s28
    %p34 = scmp.eq.s32.totalorder %s15, 0
    %p35 = por %p33, %p34
    %p36 = scmp.ne.s32.totalorder %s25, %s28
    %p37 = scmp.eq.s32.totalorder %s20, 1
    %p38 = por %p36, %p37
    %p39 = scmp.ne.s32.totalorder %s28, %s29
    %p40 = scmp.eq.s32.totalorder %s20, 0
    %p41 = por %p39, %p40
    %p42 = scmp.ne.s32.totalorder %s28, %s29
    %p43 = scmp.eq.s32.totalorder %s21, 1
    %p44 = por %p42, %p43
    %p46 = scmp.ne.s32.totalorder %s29, %s45
    %p47 = scmp.eq.s32.totalorder %s21, 0
    %p48 = por %p46, %p47
    %s50 = sadd.s32 %s49, 1
    %p53 = scmp.eq.s32.totalorder %s15, 1
    %p54 = scmp.ne.s32.totalorder %s49, %s51
    %p55 = scmp.eq.s32.totalorder %s15, 0
    %p56 = por %p54, %p55
    %p57 = scmp.ne.s32.totalorder %s49, %s51
    %p58 = scmp.eq.s32.totalorder %s20, 1
    %p59 = por %p57, %p58
    %p60 = scmp.ne.s32.totalorder %s51, %s52
    %p61 = scmp.eq.s32.totalorder %s20, 0
    %p62 = por %p60, %p61
    %p63 = scmp.ne.s32.totalorder %s51, %s52
    %p64 = scmp.eq.s32.totalorder %s21, 1
    %p65 = por %p63, %p64
    %p67 = scmp.ne.s32.totalorder %s52, %s66
    %p68 = scmp.eq.s32.totalorder %s21, 0
    %p69 = por %p67, %p68
    %s71 = sadd.s32 %s70, 1
    %p74 = scmp.eq.s32.totalorder %s15, 1
    %p75 = scmp.ne.s32.totalorder %s70, %s72
    %p76 = scmp.eq.s32.totalorder %s15, 0
    %p77 = por %p75, %p76
    %p78 = scmp.ne.s32.totalorder %s70, %s72
    %p79 = scmp.eq.s32.totalorder %s20, 1
    %p80 = por %p78, %p79
    %p81 = scmp.ne.s32.totalorder %s72, %s73
    %p82 = scmp.eq.s32.totalorder %s20, 0
    %p83 = por %p81, %p82
    %p84 = scmp.ne.s32.totalorder %s72, %s73
    %p85 = scmp.eq.s32.totalorder %s21, 1
    %p86 = por %p84, %p85
    %p88 = scmp.ne.s32.totalorder %s73, %s87
    %p89 = scmp.eq.s32.totalorder %s21, 0
    %p90 = por %p88, %p89
    %s92 = sadd.s32 %s91, 1
    %p95 = scmp.eq.s32.totalorder %s15, 1
    %p96 = scmp.ne.s32.totalorder %s91, %s93
    %p97 = scmp.eq.s32.totalorder %s15, 0
    %p98 = por %p96, %p97
    %p99 = scmp.ne.s32.totalorder %s91, %s93
    %p100 = scmp.eq.s32.totalorder %s20, 1
    %p101 = por %p99, %p100
    %p102 = scmp.ne.s32.totalorder %s93, %s94
    %p103 = scmp.eq.s32.totalorder %s20, 0
    %p104 = por %p102, %p103
    %p105 = scmp.ne.s32.totalorder %s93, %s94
    %p106 = scmp.eq.s32.totalorder %s21, 1
    %p107 = por %p105, %p106
    %p109 = scmp.ne.s32.totalorder %s94, %s108
    %p110 = scmp.eq.s32.totalorder %s21, 0
    %p111 = por %p109, %p110
    %s113 = sadd.s32 %s112, 1
    %p116 = scmp.eq.s32.totalorder %s15, 1
    %p117 = scmp.ne.s32.totalorder %s112, %s114
    %p118 = scmp.eq.s32.totalorder %s15, 0
    %p119 = por %p117, %p118
    %p120 = scmp.ne.s32.totalorder %s112, %s114
    %p121 = scmp.eq.s32.totalorder %s20, 1
    %p122 = por %p120, %p121
    %p123 = scmp.ne.s32.totalorder %s114, %s115
    %p124 = scmp.eq.s32.totalorder %s20, 0
    %p125 = por %p123, %p124
    %p126 = scmp.ne.s32.totalorder %s114, %s115
    %p127 = scmp.eq.s32.totalorder %s21, 1
    %p128 = por %p126, %p127
    %p130 = scmp.ne.s32.totalorder %s115, %s129
    %p131 = scmp.eq.s32.totalorder %s21, 0
    %p132 = por %p130, %p131
    %s134 = sadd.s32 %s133, 1
    %p137 = scmp.eq.s32.totalorder %s15, 1
    %p138 = scmp.ne.s32.totalorder %s133, %s135
    %p139 = scmp.eq.s32.totalorder %s15, 0
    %p140 = por %p138, %p139
    %p141 = scmp.ne.s32.totalorder %s133, %s135
    %p142 = scmp.eq.s32.totalorder %s20, 1
    %p143 = por %p141, %p142
    %p144 = scmp.ne.s32.totalorder %s135, %s136
    %p145 = scmp.eq.s32.totalorder %s20, 0
    %p146 = por %p144, %p145
    %p147 = scmp.ne.s32.totalorder %s135, %s136
    %p148 = scmp.eq.s32.totalorder %s21, 1
    %p149 = por %p147, %p148
    %p151 = scmp.ne.s32.totalorder %s136, %s150
    %p152 = scmp.eq.s32.totalorder %s21, 0
    %p153 = por %p151, %p152
    %s155 = sadd.s32 %s154, 1
    %p158 = scmp.eq.s32.totalorder %s15, 1
    %p159 = scmp.ne.s32.totalorder %s154, %s156
    %p160 = scmp.eq.s32.totalorder %s15, 0
    %p161 = por %p159, %p160
    %p162 = scmp.ne.s32.totalorder %s154, %s156
    %p163 = scmp.eq.s32.totalorder %s20, 1
    %p164 = por %p162, %p163
    %p165 = scmp.ne.s32.totalorder %s156, %s157
    %p166 = scmp.eq.s32.totalorder %s20, 0
    %p167 = por %p165, %p166
    %p168 = scmp.ne.s32.totalorder %s156, %s157
    %p169 = scmp.eq.s32.totalorder %s21, 1
    %p170 = por %p168, %p169
    %p172 = scmp.ne.s32.totalorder %s157, %s171
    %p173 = scmp.eq.s32.totalorder %s21, 0
    %p174 = por %p172, %p173
    %s176 = sadd.s32 %s175, 1
    %p179 = scmp.eq.s32.totalorder %s15, 1
    %p180 = scmp.ne.s32.totalorder %s175, %s177
    %p181 = scmp.eq.s32.totalorder %s15, 0
    %p182 = por %p180, %p181
    %p183 = scmp.ne.s32.totalorder %s175, %s177
    %p184 = scmp.eq.s32.totalorder %s20, 1
    %p185 = por %p183, %p184
    %p186 = scmp.ne.s32.totalorder %s177, %s178
    %p187 = scmp.eq.s32.totalorder %s20, 0
    %p188 = por %p186, %p187
    %p189 = scmp.ne.s32.totalorder %s177, %s178
    %p190 = scmp.eq.s32.totalorder %s21, 1
    %p191 = por %p189, %p190
    %p193 = scmp.ne.s32.totalorder %s178, %s192
    %p194 = scmp.eq.s32.totalorder %s21, 0
    %p195 = por %p193, %p194
    %s197 = sadd.s32 %s196, 1
    %p200 = scmp.eq.s32.totalorder %s15, 1
    %p201 = scmp.ne.s32.totalorder %s196, %s198
    %p202 = scmp.eq.s32.totalorder %s15, 0
    %p203 = por %p201, %p202
    %p204 = scmp.ne.s32.totalorder %s196, %s198
    %p205 = scmp.eq.s32.totalorder %s20, 1
    %p206 = por %p204, %p205
    %p207 = scmp.ne.s32.totalorder %s198, %s199
    %p208 = scmp.eq.s32.totalorder %s20, 0
    %p209 = por %p207, %p208
    %p210 = scmp.ne.s32.totalorder %s198, %s199
    %p211 = scmp.eq.s32.totalorder %s21, 1
    %p212 = por %p210, %p211
    %p214 = scmp.ne.s32.totalorder %s199, %s213
    %p215 = scmp.eq.s32.totalorder %s21, 0
    %p216 = por %p214, %p215
    %s217 = ssub.s32 %s15, %s22
    %p218 = scmp.eq.s32.totalorder %s217, 0
    %s220 = sadd.s32 %s219, 1
    %s221 = scalar_select %p218, %s219, %s220
    %p224 = pneg %p218
    %p225 = scmp.eq.s32.totalorder %s15, 1
    %p226 = por %p224, %p225
    %p227 = scmp.ne.s32.totalorder %s219, %s222
    %p228 = scmp.eq.s32.totalorder %s15, 0
    %p229 = por %p227, %p228
    %p230 = scmp.ne.s32.totalorder %s219, %s222
    %p231 = scmp.eq.s32.totalorder %s20, 1
    %p232 = por %p230, %p231
    %p233 = scmp.ne.s32.totalorder %s222, %s223
    %p234 = scmp.eq.s32.totalorder %s20, 0
    %p235 = por %p233, %p234
    %p236 = scmp.ne.s32.totalorder %s222, %s223
    %p237 = scmp.eq.s32.totalorder %s21, 1
    %p238 = por %p236, %p237
    %p240 = scmp.ne.s32.totalorder %s223, %s239
    %p241 = scmp.eq.s32.totalorder %s21, 0
    %p242 = por %p240, %p241
    %p243 = scmp.le.s32.totalorder 1, %s15
    %p244 = scmp.lt.s32.totalorder %s15, 3
    %p245 = pnand %p243, %p244
    %p246 = pneg %p245
    // Predicated region
    $region9: #{actor_critic_forward.1} parent=5 // pred_check
      _
    $region10: #{actor_critic_forward.1} parent=5 // pred_check_branch
      %248 = sbr.rel (%p245) target = $region12
    $region11: #{actor_critic_forward.1} parent=5 // pred_region
      %s249 = ssub.s32 %s15, 1
      // Predicated region
      $region13: #{actor_critic_forward.1} parent=11 // pred_check
        %p250 = pneg %p62
      $region14: #{actor_critic_forward.1} parent=11 // pred_check_branch
        %252 = sbr.rel (%p250) target = $region16
      $region15: #{actor_critic_forward.1} parent=11 // pred_region
        _
      $region16: #{actor_critic_forward.1} parent=11 // pred_fallthru
        _
      // Predicated region
      $region17: #{actor_critic_forward.1} parent=11 // pred_check
        %p253 = pneg %p83
      $region18: #{actor_critic_forward.1} parent=11 // pred_check_branch
        %255 = sbr.rel (%p253) target = $region20
      $region19: #{actor_critic_forward.1} parent=11 // pred_region
        _
      $region20: #{actor_critic_forward.1} parent=11 // pred_fallthru
        _
      // Predicated region
      $region21: #{actor_critic_forward.1} parent=11 // pred_check
        %p256 = pneg %p104
      $region22: #{actor_critic_forward.1} parent=11 // pred_check_branch
        %258 = sbr.rel (%p256) target = $region24
      $region23: #{actor_critic_forward.1} parent=11 // pred_region
        _
      $region24: #{actor_critic_forward.1} parent=11 // pred_fallthru
        _
      // Predicated region
      $region25: #{actor_critic_forward.1} parent=11 // pred_check
        %p259 = pneg %p125
      $region26: #{actor_critic_forward.1} parent=11 // pred_check_branch
        %261 = sbr.rel (%p259) target = $region28
      $region27: #{actor_critic_forward.1} parent=11 // pred_region
        _
      $region28: #{actor_critic_forward.1} parent=11 // pred_fallthru
        _
      // Predicated region
      $region29: #{actor_critic_forward.1} parent=11 // pred_check
        %p262 = pneg %p146
      $region30: #{actor_critic_forward.1} parent=11 // pred_check_branch
        %264 = sbr.rel (%p262) target = $region32
      $region31: #{actor_critic_forward.1} parent=11 // pred_region
        _
      $region32: #{actor_critic_forward.1} parent=11 // pred_fallthru
        _
      // Predicated region
      $region33: #{actor_critic_forward.1} parent=11 // pred_check
        %p265 = pneg %p167
      $region34: #{actor_critic_forward.1} parent=11 // pred_check_branch
        %267 = sbr.rel (%p265) target = $region36
      $region35: #{actor_critic_forward.1} parent=11 // pred_region
        _
      $region36: #{actor_critic_forward.1} parent=11 // pred_fallthru
        _
      // Predicated region
      $region37: #{actor_critic_forward.1} parent=11 // pred_check
        %p268 = pneg %p188
      $region38: #{actor_critic_forward.1} parent=11 // pred_check_branch
        %270 = sbr.rel (%p268) target = $region40
      $region39: #{actor_critic_forward.1} parent=11 // pred_region
        _
      $region40: #{actor_critic_forward.1} parent=11 // pred_fallthru
        _
      // Predicated region
      $region41: #{actor_critic_forward.1} parent=11 // pred_check
        %p271 = pneg %p209
      $region42: #{actor_critic_forward.1} parent=11 // pred_check_branch
        %273 = sbr.rel (%p271) target = $region44
      $region43: #{actor_critic_forward.1} parent=11 // pred_region
        _
      $region44: #{actor_critic_forward.1} parent=11 // pred_fallthru
        _
    $region12: #{actor_critic_forward.1} parent=5 // pred_fallthru
      _
    %p274 = scmp.lt.s32.totalorder %s15, 2
    // Predicated region
    $region45: #{actor_critic_forward.1} parent=5 // pred_check
      %p275 = pneg %p274
    $region46: #{actor_critic_forward.1} parent=5 // pred_check_branch
      %277 = sbr.rel (%p275) target = $region48
    $region47: #{actor_critic_forward.1} parent=5 // pred_region
      // Predicated region
      $region49: #{actor_critic_forward.1} parent=47 // pred_check
        %p278 = pneg %p35
      $region50: #{actor_critic_forward.1} parent=47 // pred_check_branch
        %280 = sbr.rel (%p278) target = $region52
      $region51: #{actor_critic_forward.1} parent=47 // pred_region
        %s281 = smul.u32 2, %s15
        %p282 = scmp.lt.s32.totalorder %s281, 3
        %s283 = scalar_select %p282, %s281, 3
        %s284 = smul.addr %s283, 2
        %s285 = smul.addr %s284, 8
        %s286 = scalar_lea.vmem %s0, %s285
        %s287 = smul.u32 2, %s15
      $region52: #{actor_critic_forward.1} parent=47 // pred_fallthru
        _
    $region48: #{actor_critic_forward.1} parent=5 // pred_fallthru
      _
    %p288 = scmp.le.s32.totalorder 1, %s15
    %p289 = scmp.lt.s32.totalorder %s15, 3
    %p290 = pnand %p288, %p289
    %p291 = pneg %p290
    // Predicated region
    $region53: #{actor_critic_forward.1} parent=5 // pred_check
      _
    $region54: #{actor_critic_forward.1} parent=5 // pred_check_branch
      %293 = sbr.rel (%p290) target = $region56
    $region55: #{actor_critic_forward.1} parent=5 // pred_region
      %s294 = ssub.s32 %s15, 1
      %s295 = smul.u32 2, %s20
      %p296 = scmp.lt.s32.totalorder %s295, 3
      %s297 = scalar_select %p296, %s295, 3
      %s298 = smul.addr %s297, 2
      %s299 = smul.addr %s298, 8
      %s300 = scalar_lea.vmem %s0, %s299
      %p301 = pneg %p41
      %p302 = pneg %p38
      %p303 = pneg %p62
      %p304 = pneg %p59
      %p305 = pneg %p83
      %p306 = pneg %p80
      %p307 = pneg %p104
      %p308 = pneg %p101
      %p309 = pneg %p125
      %p310 = pneg %p122
      %p311 = pneg %p146
      %p312 = pneg %p143
      %p313 = pneg %p167
      %p314 = pneg %p164
      %p315 = pneg %p188
      %p316 = pneg %p185
      %p317 = pneg %p209
      %p318 = pneg %p206
      %p319 = pneg %p235
      %p320 = pneg %p232
      %s321 = smul.u32 2, %s20
      %p322 = scmp.lt.s32.totalorder %s321, 3
      %s323 = scalar_select %p322, %s321, 3
      %s324 = smul.addr %s323, 8
      %s325 = scalar_lea.vmem %s9, %s324
      %s326 = smul.u32 2, %s20
      %p327 = scmp.lt.s32.totalorder %s326, 3
      %s328 = scalar_select %p327, %s326, 3
      %s329 = smul.addr %s328, 2
      %s330 = smul.addr %s329, 8
      %s331 = scalar_lea.vmem %s0, %s330
      %s332 = smul.u32 2, %s20
      %s333 = smul.u32 2, %s20
      %p334 = scmp.lt.s32.totalorder %s333, 3
      %s335 = scalar_select %p334, %s333, 3
      %s336 = smul.addr %s335, 8
      %s337 = scalar_lea.vmem %s9, %s336
      %s338 = smul.u32 2, %s20
      %v340 = vld [vmem:[%s331] sm:$0xff]
      %v341 = vld [vmem:[%s331 + $0x8] sm:$0xff]
      %v342 = vld [vmem:[%s331 + $0x10] sm:$0xff]
      %v343 = vld [vmem:[%s331 + $0x18] sm:$0xff]
      %v344 = vpack.c.bf16 %v342, %v340
      %v345 = vpack.c.bf16 %v343, %v341
      %v346 = vld [vmem:[%s1] sm:$0xff]
      %v347 = vld [vmem:[%s1 + $0x8] sm:$0xff]
      %v348 = vld [vmem:[%s1 + $0x10] sm:$0xf]
      %v349 = vld [vmem:[%s1 + $0x14] sm:$0xff]
      %v350 = vld [vmem:[%s1 + $0x1c] sm:$0xff]
      %v351 = vld [vmem:[%s1 + $0x24] sm:$0xf]
      %v352 = vld [vmem:[%s1 + $0x28] sm:$0xff]
      %v353 = vld [vmem:[%s1 + $0x30] sm:$0xff]
      %v354 = vld [vmem:[%s1 + $0x38] sm:$0xf]
      %v355 = vld [vmem:[%s1 + $0x3c] sm:$0xff]
      %v356 = vld [vmem:[%s1 + $0x44] sm:$0xff]
      %v357 = vld [vmem:[%s1 + $0x4c] sm:$0xf]
      %v358 = vld [vmem:[%s1 + $0x50] sm:$0xff]
      %v359 = vld [vmem:[%s1 + $0x58] sm:$0xff]
      %v360 = vld [vmem:[%s1 + $0x60] sm:$0xf]
      %v361 = vld [vmem:[%s1 + $0x64] sm:$0xff]
      %v362 = vld [vmem:[%s1 + $0x6c] sm:$0xff]
      %v363 = vld [vmem:[%s1 + $0x74] sm:$0xf]
      %v364 = vld [vmem:[%s1 + $0x78] sm:$0xff]
      %v365 = vld [vmem:[%s1 + $0x80] sm:$0xff]
      %v366 = vld [vmem:[%s1 + $0x88] sm:$0xf]
      %v367 = vld [vmem:[%s1 + $0x8c] sm:$0xff]
      %v368 = vld [vmem:[%s1 + $0x94] sm:$0xff]
      %v369 = vld [vmem:[%s1 + $0x9c] sm:$0xf]
      %v370 = vld [vmem:[%s1 + $0xa0] sm:$0xff]
      %v371 = vld [vmem:[%s1 + $0xa8] sm:$0xff]
      %v372 = vld [vmem:[%s1 + $0xb0] sm:$0xf]
      %v373 = vld [vmem:[%s1 + $0xb4] sm:$0xff]
      %v374 = vld [vmem:[%s1 + $0xbc] sm:$0xff]
      %v375 = vld [vmem:[%s1 + $0xc4] sm:$0xf]
      %v376 = vld [vmem:[%s1 + $0xc8] sm:$0xff]
      %v377 = vld [vmem:[%s1 + $0xd0] sm:$0xff]
      %v378 = vld [vmem:[%s1 + $0xd8] sm:$0xf]
      %v379 = vld [vmem:[%s1 + $0xdc] sm:$0xff]
      %v380 = vld [vmem:[%s1 + $0xe4] sm:$0xff]
      %v381 = vld [vmem:[%s1 + $0xec] sm:$0xf]
      %v382 = vld [vmem:[%s1 + $0xf0] sm:$0xff]
      %v383 = vld [vmem:[%s1 + $0xf8] sm:$0xff]
      %v384 = vld [vmem:[%s1 + $0x100] sm:$0xf]
      %v385 = vld [vmem:[%s1 + $0x104] sm:$0xff]
      %v386 = vld [vmem:[%s1 + $0x10c] sm:$0xff]
      %v387 = vld [vmem:[%s1 + $0x114] sm:$0xf]
      %v388 = vld [vmem:[%s1 + $0x118] sm:$0xff]
      %v389 = vld [vmem:[%s1 + $0x120] sm:$0xff]
      %v390 = vld [vmem:[%s1 + $0x128] sm:$0xf]
      %v391 = vld [vmem:[%s1 + $0x12c] sm:$0xff]
      %v392 = vld [vmem:[%s1 + $0x134] sm:$0xff]
      %v393 = vld [vmem:[%s1 + $0x13c] sm:$0xf]
      %v394 = vld [vmem:[%s1 + $0x140] sm:$0xff]
      %v395 = vld [vmem:[%s1 + $0x148] sm:$0xff]
      %v396 = vld [vmem:[%s1 + $0x150] sm:$0xf]
      %v397 = vld [vmem:[%s1 + $0x154] sm:$0xff]
      %v398 = vld [vmem:[%s1 + $0x15c] sm:$0xff]
      %v399 = vld [vmem:[%s1 + $0x164] sm:$0xf]
      %v400 = vld [vmem:[%s1 + $0x168] sm:$0xff]
      %v401 = vld [vmem:[%s1 + $0x170] sm:$0xff]
      %v402 = vld [vmem:[%s1 + $0x178] sm:$0xf]
      %v403 = vld [vmem:[%s1 + $0x17c] sm:$0xff]
      %v404 = vld [vmem:[%s1 + $0x184] sm:$0xff]
      %v405 = vld [vmem:[%s1 + $0x18c] sm:$0xf]
      %v406 = vld [vmem:[%s1 + $0x190] sm:$0xff]
      %v407 = vld [vmem:[%s1 + $0x198] sm:$0xff]
      %v408 = vld [vmem:[%s1 + $0x1a0] sm:$0xf]
      %v409 = vld [vmem:[%s1 + $0x1a4] sm:$0xff]
      %v410 = vld [vmem:[%s1 + $0x1ac] sm:$0xff]
      %v411 = vld [vmem:[%s1 + $0x1b4] sm:$0xf]
      %v412 = vld [vmem:[%s1 + $0x1b8] sm:$0xff]
      %v413 = vld [vmem:[%s1 + $0x1c0] sm:$0xff]
      %v414 = vld [vmem:[%s1 + $0x1c8] sm:$0xf]
      %v415 = vld [vmem:[%s1 + $0x1cc] sm:$0xff]
      %v416 = vld [vmem:[%s1 + $0x1d4] sm:$0xff]
      %v417 = vld [vmem:[%s1 + $0x1dc] sm:$0xf]
      %v418 = vld [vmem:[%s1 + $0x1e0] sm:$0xff]
      %v419 = vld [vmem:[%s1 + $0x1e8] sm:$0xff]
      %v420 = vld [vmem:[%s1 + $0x1f0] sm:$0xf]
      %v421 = vld [vmem:[%s1 + $0x1f4] sm:$0xff]
      %v422 = vld [vmem:[%s1 + $0x1fc] sm:$0xff]
      %v423 = vld [vmem:[%s1 + $0x204] sm:$0xf]
      %v424 = vld [vmem:[%s1 + $0x208] sm:$0xff]
      %v425 = vld [vmem:[%s1 + $0x210] sm:$0xff]
      %v426 = vld [vmem:[%s1 + $0x218] sm:$0xf]
      %v427 = vld [vmem:[%s1 + $0x21c] sm:$0xff]
      %v428 = vld [vmem:[%s1 + $0x224] sm:$0xff]
      %v429 = vld [vmem:[%s1 + $0x22c] sm:$0xf]
      %v430 = vld [vmem:[%s1 + $0x230] sm:$0xff]
      %v431 = vld [vmem:[%s1 + $0x238] sm:$0xff]
      %v432 = vld [vmem:[%s1 + $0x240] sm:$0xf]
      %v433 = vld [vmem:[%s1 + $0x244] sm:$0xff]
      %v434 = vld [vmem:[%s1 + $0x24c] sm:$0xff]
      %v435 = vld [vmem:[%s1 + $0x254] sm:$0xf]
      %v436 = vld [vmem:[%s1 + $0x258] sm:$0xff]
      %v437 = vld [vmem:[%s1 + $0x260] sm:$0xff]
      %v438 = vld [vmem:[%s1 + $0x268] sm:$0xf]
      %v439 = vld [vmem:[%s1 + $0x26c] sm:$0xff]
      %v440 = vld [vmem:[%s1 + $0x274] sm:$0xff]
      %v441 = vld [vmem:[%s1 + $0x27c] sm:$0xf]
      %v442 = vld [vmem:[%s2] sm:$0x1f]
      %v444 = vperm.slane %v442, 0
      %v445 = vperm.slane %v442, 1
      %v446 = vperm.slane %v442, 2
      %v447 = vperm.slane %v442, 3
      %v448 = vperm.slane %v442, 4
      %v550 = vunpack.c.l.b16 %v346
      %v551 = vunpack.c.h.b16 %v346
      %v552 = vunpack.c.l.b16 %v347
      %v553 = vunpack.c.h.b16 %v347
      %v554 = vunpack.c.l.b16 %v348
      %v555 = vunpack.c.l.b16 %v349
      %v556 = vunpack.c.h.b16 %v349
      %v557 = vunpack.c.l.b16 %v350
      %v558 = vunpack.c.h.b16 %v350
      %v559 = vunpack.c.l.b16 %v351
      %v560 = vunpack.c.l.b16 %v352
      %v561 = vunpack.c.h.b16 %v352
      %v562 = vunpack.c.l.b16 %v353
      %v563 = vunpack.c.h.b16 %v353
      %v564 = vunpack.c.l.b16 %v354
      %v565 = vunpack.c.l.b16 %v355
      %v566 = vunpack.c.h.b16 %v355
      %v567 = vunpack.c.l.b16 %v356
      %v568 = vunpack.c.h.b16 %v356
      %v569 = vunpack.c.l.b16 %v357
      %v570 = vunpack.c.l.b16 %v358
      %v571 = vunpack.c.h.b16 %v358
      %v572 = vunpack.c.l.b16 %v359
      %v573 = vunpack.c.h.b16 %v359
      %v574 = vunpack.c.l.b16 %v360
      %v575 = vunpack.c.l.b16 %v361
      %v576 = vunpack.c.h.b16 %v361
      %v577 = vunpack.c.l.b16 %v362
      %v578 = vunpack.c.h.b16 %v362
      %v579 = vunpack.c.l.b16 %v363
      %v580 = vunpack.c.l.b16 %v364
      %v581 = vunpack.c.h.b16 %v364
      %v582 = vunpack.c.l.b16 %v365
      %v583 = vunpack.c.h.b16 %v365
      %v584 = vunpack.c.l.b16 %v366
      %v585 = vunpack.c.l.b16 %v367
      %v586 = vunpack.c.h.b16 %v367
      %v587 = vunpack.c.l.b16 %v368
      %v588 = vunpack.c.h.b16 %v368
      %v589 = vunpack.c.l.b16 %v369
      %v590 = vunpack.c.l.b16 %v370
      %v591 = vunpack.c.h.b16 %v370
      %v592 = vunpack.c.l.b16 %v371
      %v593 = vunpack.c.h.b16 %v371
      %v594 = vunpack.c.l.b16 %v372
      %v595 = vunpack.c.l.b16 %v373
      %v596 = vunpack.c.h.b16 %v373
      %v597 = vunpack.c.l.b16 %v374
      %v598 = vunpack.c.h.b16 %v374
      %v599 = vunpack.c.l.b16 %v375
      %v600 = vunpack.c.l.b16 %v376
      %v601 = vunpack.c.h.b16 %v376
      %v602 = vunpack.c.l.b16 %v377
      %v603 = vunpack.c.h.b16 %v377
      %v604 = vunpack.c.l.b16 %v378
      %v605 = vunpack.c.l.b16 %v379
      %v606 = vunpack.c.h.b16 %v379
      %v607 = vunpack.c.l.b16 %v380
      %v608 = vunpack.c.h.b16 %v380
      %v609 = vunpack.c.l.b16 %v381
      %v610 = vunpack.c.l.b16 %v382
      %v611 = vunpack.c.h.b16 %v382
      %v612 = vunpack.c.l.b16 %v383
      %v613 = vunpack.c.h.b16 %v383
      %v614 = vunpack.c.l.b16 %v384
      %v615 = vunpack.c.l.b16 %v385
      %v616 = vunpack.c.h.b16 %v385
      %v617 = vunpack.c.l.b16 %v386
      %v618 = vunpack.c.h.b16 %v386
      %v619 = vunpack.c.l.b16 %v387
      %v620 = vunpack.c.l.b16 %v388
      %v621 = vunpack.c.h.b16 %v388
      %v622 = vunpack.c.l.b16 %v389
      %v623 = vunpack.c.h.b16 %v389
      %v624 = vunpack.c.l.b16 %v390
      %v625 = vunpack.c.l.b16 %v391
      %v626 = vunpack.c.h.b16 %v391
      %v627 = vunpack.c.l.b16 %v392
      %v628 = vunpack.c.h.b16 %v392
      %v629 = vunpack.c.l.b16 %v393
      %v630 = vunpack.c.l.b16 %v394
      %v631 = vunpack.c.h.b16 %v394
      %v632 = vunpack.c.l.b16 %v395
      %v633 = vunpack.c.h.b16 %v395
      %v634 = vunpack.c.l.b16 %v396
      %v635 = vunpack.c.l.b16 %v397
      %v636 = vunpack.c.h.b16 %v397
      %v637 = vunpack.c.l.b16 %v398
      %v638 = vunpack.c.h.b16 %v398
      %v639 = vunpack.c.l.b16 %v399
      %v640 = vunpack.c.l.b16 %v400
      %v641 = vunpack.c.h.b16 %v400
      %v642 = vunpack.c.l.b16 %v401
      %v643 = vunpack.c.h.b16 %v401
      %v644 = vunpack.c.l.b16 %v402
      %v645 = vunpack.c.l.b16 %v403
      %v646 = vunpack.c.h.b16 %v403
      %v647 = vunpack.c.l.b16 %v404
      %v648 = vunpack.c.h.b16 %v404
      %v649 = vunpack.c.l.b16 %v405
      %v650 = vunpack.c.l.b16 %v406
      %v651 = vunpack.c.h.b16 %v406
      %v652 = vunpack.c.l.b16 %v407
      %v653 = vunpack.c.h.b16 %v407
      %v654 = vunpack.c.l.b16 %v408
      %v655 = vunpack.c.l.b16 %v409
      %v656 = vunpack.c.h.b16 %v409
      %v657 = vunpack.c.l.b16 %v410
      %v658 = vunpack.c.h.b16 %v410
      %v659 = vunpack.c.l.b16 %v411
      %v660 = vunpack.c.l.b16 %v412
      %v661 = vunpack.c.h.b16 %v412
      %v662 = vunpack.c.l.b16 %v413
      %v663 = vunpack.c.h.b16 %v413
      %v664 = vunpack.c.l.b16 %v414
      %v665 = vunpack.c.l.b16 %v415
      %v666 = vunpack.c.h.b16 %v415
      %v667 = vunpack.c.l.b16 %v416
      %v668 = vunpack.c.h.b16 %v416
      %v669 = vunpack.c.l.b16 %v417
      %v670 = vunpack.c.l.b16 %v418
      %v671 = vunpack.c.h.b16 %v418
      %v672 = vunpack.c.l.b16 %v419
      %v673 = vunpack.c.h.b16 %v419
      %v674 = vunpack.c.l.b16 %v420
      %v675 = vunpack.c.l.b16 %v421
      %v676 = vunpack.c.h.b16 %v421
      %v677 = vunpack.c.l.b16 %v422
      %v678 = vunpack.c.h.b16 %v422
      %v679 = vunpack.c.l.b16 %v423
      %v680 = vunpack.c.l.b16 %v424
      %v681 = vunpack.c.h.b16 %v424
      %v682 = vunpack.c.l.b16 %v425
      %v683 = vunpack.c.h.b16 %v425
      %v684 = vunpack.c.l.b16 %v426
      %v685 = vunpack.c.l.b16 %v427
      %v686 = vunpack.c.h.b16 %v427
      %v687 = vunpack.c.l.b16 %v428
      %v688 = vunpack.c.h.b16 %v428
      %v689 = vunpack.c.l.b16 %v429
      %v690 = vunpack.c.l.b16 %v430
      %v691 = vunpack.c.h.b16 %v430
      %v692 = vunpack.c.l.b16 %v431
      %v693 = vunpack.c.h.b16 %v431
      %v694 = vunpack.c.l.b16 %v432
      %v695 = vunpack.c.l.b16 %v433
      %v696 = vunpack.c.h.b16 %v433
      %v697 = vunpack.c.l.b16 %v434
      %v698 = vunpack.c.h.b16 %v434
      %v699 = vunpack.c.l.b16 %v435
      %v700 = vunpack.c.l.b16 %v436
      %v701 = vunpack.c.h.b16 %v436
      %v702 = vunpack.c.l.b16 %v437
      %v703 = vunpack.c.h.b16 %v437
      %v704 = vunpack.c.l.b16 %v438
      %v705 = vunpack.c.l.b16 %v439
      %v706 = vunpack.c.h.b16 %v439
      %v707 = vunpack.c.l.b16 %v440
      %v708 = vunpack.c.h.b16 %v440
      %v709 = vunpack.c.l.b16 %v441
      %v710 = vpack.c.b16 %v555, %v550
      %v711 = vpack.c.b16 %v556, %v551
      %v712 = vpack.c.b16 %v557, %v552
      %v713 = vpack.c.b16 %v558, %v553
      %v714 = vpack.c.b16 %v559, %v554
      %v715 = vpack.c.b16 %v565, %v560
      %v716 = vpack.c.b16 %v566, %v561
      %v717 = vpack.c.b16 %v567, %v562
      %v718 = vpack.c.b16 %v568, %v563
      %v719 = vpack.c.b16 %v569, %v564
      %v720 = vpack.c.b16 %v575, %v570
      %v721 = vpack.c.b16 %v576, %v571
      %v722 = vpack.c.b16 %v577, %v572
      %v723 = vpack.c.b16 %v578, %v573
      %v724 = vpack.c.b16 %v579, %v574
      %v725 = vpack.c.b16 %v585, %v580
      %v726 = vpack.c.b16 %v586, %v581
      %v727 = vpack.c.b16 %v587, %v582
      %v728 = vpack.c.b16 %v588, %v583
      %v729 = vpack.c.b16 %v589, %v584
      %v730 = vpack.c.b16 %v595, %v590
      %v731 = vpack.c.b16 %v596, %v591
      %v732 = vpack.c.b16 %v597, %v592
      %v733 = vpack.c.b16 %v598, %v593
      %v734 = vpack.c.b16 %v599, %v594
      %v735 = vpack.c.b16 %v605, %v600
      %v736 = vpack.c.b16 %v606, %v601
      %v737 = vpack.c.b16 %v607, %v602
      %v738 = vpack.c.b16 %v608, %v603
      %v739 = vpack.c.b16 %v609, %v604
      %v740 = vpack.c.b16 %v615, %v610
      %v741 = vpack.c.b16 %v616, %v611
      %v742 = vpack.c.b16 %v617, %v612
      %v743 = vpack.c.b16 %v618, %v613
      %v744 = vpack.c.b16 %v619, %v614
      %v745 = vpack.c.b16 %v625, %v620
      %v746 = vpack.c.b16 %v626, %v621
      %v747 = vpack.c.b16 %v627, %v622
      %v748 = vpack.c.b16 %v628, %v623
      %v749 = vpack.c.b16 %v629, %v624
      %v750 = vpack.c.b16 %v635, %v630
      %v751 = vpack.c.b16 %v636, %v631
      %v752 = vpack.c.b16 %v637, %v632
      %v753 = vpack.c.b16 %v638, %v633
      %v754 = vpack.c.b16 %v639, %v634
      %v755 = vpack.c.b16 %v645, %v640
      %v756 = vpack.c.b16 %v646, %v641
      %v757 = vpack.c.b16 %v647, %v642
      %v758 = vpack.c.b16 %v648, %v643
      %v759 = vpack.c.b16 %v649, %v644
      %v760 = vpack.c.b16 %v655, %v650
      %v761 = vpack.c.b16 %v656, %v651
      %v762 = vpack.c.b16 %v657, %v652
      %v763 = vpack.c.b16 %v658, %v653
      %v764 = vpack.c.b16 %v659, %v654
      %v765 = vpack.c.b16 %v665, %v660
      %v766 = vpack.c.b16 %v666, %v661
      %v767 = vpack.c.b16 %v667, %v662
      %v768 = vpack.c.b16 %v668, %v663
      %v769 = vpack.c.b16 %v669, %v664
      %v770 = vpack.c.b16 %v675, %v670
      %v771 = vpack.c.b16 %v676, %v671
      %v772 = vpack.c.b16 %v677, %v672
      %v773 = vpack.c.b16 %v678, %v673
      %v774 = vpack.c.b16 %v679, %v674
      %v775 = vpack.c.b16 %v685, %v680
      %v776 = vpack.c.b16 %v686, %v681
      %v777 = vpack.c.b16 %v687, %v682
      %v778 = vpack.c.b16 %v688, %v683
      %v779 = vpack.c.b16 %v689, %v684
      %v780 = vpack.c.b16 %v695, %v690
      %v781 = vpack.c.b16 %v696, %v691
      %v782 = vpack.c.b16 %v697, %v692
      %v783 = vpack.c.b16 %v698, %v693
      %v784 = vpack.c.b16 %v699, %v694
      %v785 = vpack.c.b16 %v705, %v700
      %v786 = vpack.c.b16 %v706, %v701
      %v787 = vpack.c.b16 %v707, %v702
      %v788 = vpack.c.b16 %v708, %v703
      %v789 = vpack.c.b16 %v709, %v704
      %870 = vmatpush.bf16.msra.mxu0 %v745
      %871 = vmatpush.bf16.msra.mxu0 %v740
      %872 = vmatpush.bf16.msra.mxu0 %v735
      %873 = vmatpush.bf16.msra.mxu0 %v730
      %874 = vmatpush.bf16.msra.mxu0 %v725
      %875 = vmatpush.bf16.msra.mxu0 %v720
      %876 = vmatpush.bf16.msra.mxu0 %v715
      %877 = vmatpush.bf16.msra.mxu0 %v710
      %878 = vmatmul.bf16.gmra.mxu0 %v344
      %v879 = vpop.f32.mrf.mxu0
      %v880 = vadd.f32 %v444, %v879
      %v881 = vpop.f32.mrf.mxu0
      %v882 = vadd.f32 %v444, %v881
      %883 = vdwg.mxu0
      %884 = vmatpush.bf16.msra.mxu0 %v785
      %885 = vmatpush.bf16.msra.mxu0 %v780
      %886 = vmatpush.bf16.msra.mxu0 %v775
      %887 = vmatpush.bf16.msra.mxu0 %v770
      %888 = vmatpush.bf16.msra.mxu0 %v765
      %889 = vmatpush.bf16.msra.mxu0 %v760
      %890 = vmatpush.bf16.msra.mxu0 %v755
      %891 = vmatpush.bf16.msra.mxu0 %v750
      %892 = vmatmul.bf16.gmra.mxu0 %v345
      %v893 = vpop.f32.mrf.mxu0
      %v894 = vadd.f32 %v880, %v893
      %v895 = vpop.f32.mrf.mxu0
      %v896 = vadd.f32 %v882, %v895
      %897 = vdwg.mxu0
      %898 = vmatpush.bf16.msra.mxu0 %v746
      %899 = vmatpush.bf16.msra.mxu0 %v741
      %900 = vmatpush.bf16.msra.mxu0 %v736
      %901 = vmatpush.bf16.msra.mxu0 %v731
      %902 = vmatpush.bf16.msra.mxu0 %v726
      %903 = vmatpush.bf16.msra.mxu0 %v721
      %904 = vmatpush.bf16.msra.mxu0 %v716
      %905 = vmatpush.bf16.msra.mxu0 %v711
      %906 = vmatmul.bf16.gmra.mxu0 %v344
      %v907 = vpop.f32.mrf.mxu0
      %v908 = vadd.f32 %v445, %v907
      %v909 = vpop.f32.mrf.mxu0
      %v910 = vadd.f32 %v445, %v909
      %911 = vdwg.mxu0
      %912 = vmatpush.bf16.msra.mxu0 %v786
      %913 = vmatpush.bf16.msra.mxu0 %v781
      %914 = vmatpush.bf16.msra.mxu0 %v776
      %915 = vmatpush.bf16.msra.mxu0 %v771
      %916 = vmatpush.bf16.msra.mxu0 %v766
      %917 = vmatpush.bf16.msra.mxu0 %v761
      %918 = vmatpush.bf16.msra.mxu0 %v756
      %919 = vmatpush.bf16.msra.mxu0 %v751
      %920 = vmatmul.bf16.gmra.mxu0 %v345
      %v921 = vpop.f32.mrf.mxu0
      %v922 = vadd.f32 %v908, %v921
      %v923 = vpop.f32.mrf.mxu0
      %v924 = vadd.f32 %v910, %v923
      %925 = vdwg.mxu0
      %926 = vmatpush.bf16.msra.mxu0 %v747
      %927 = vmatpush.bf16.msra.mxu0 %v742
      %928 = vmatpush.bf16.msra.mxu0 %v737
      %929 = vmatpush.bf16.msra.mxu0 %v732
      %930 = vmatpush.bf16.msra.mxu0 %v727
      %931 = vmatpush.bf16.msra.mxu0 %v722
      %932 = vmatpush.bf16.msra.mxu0 %v717
      %933 = vmatpush.bf16.msra.mxu0 %v712
      %934 = vmatmul.bf16.gmra.mxu0 %v344
      %v935 = vpop.f32.mrf.mxu0
      %v936 = vadd.f32 %v446, %v935
      %v937 = vpop.f32.mrf.mxu0
      %v938 = vadd.f32 %v446, %v937
      %939 = vdwg.mxu0
      %940 = vmatpush.bf16.msra.mxu0 %v787
      %941 = vmatpush.bf16.msra.mxu0 %v782
      %942 = vmatpush.bf16.msra.mxu0 %v777
      %943 = vmatpush.bf16.msra.mxu0 %v772
      %944 = vmatpush.bf16.msra.mxu0 %v767
      %945 = vmatpush.bf16.msra.mxu0 %v762
      %946 = vmatpush.bf16.msra.mxu0 %v757
      %947 = vmatpush.bf16.msra.mxu0 %v752
      %948 = vmatmul.bf16.gmra.mxu0 %v345
      %v949 = vpop.f32.mrf.mxu0
      %v950 = vadd.f32 %v936, %v949
      %v951 = vpop.f32.mrf.mxu0
      %v952 = vadd.f32 %v938, %v951
      %953 = vdwg.mxu0
      %954 = vmatpush.bf16.msra.mxu0 %v748
      %955 = vmatpush.bf16.msra.mxu0 %v743
      %956 = vmatpush.bf16.msra.mxu0 %v738
      %957 = vmatpush.bf16.msra.mxu0 %v733
      %958 = vmatpush.bf16.msra.mxu0 %v728
      %959 = vmatpush.bf16.msra.mxu0 %v723
      %960 = vmatpush.bf16.msra.mxu0 %v718
      %961 = vmatpush.bf16.msra.mxu0 %v713
      %962 = vmatmul.bf16.gmra.mxu0 %v344
      %v963 = vpop.f32.mrf.mxu0
      %v964 = vadd.f32 %v447, %v963
      %v965 = vpop.f32.mrf.mxu0
      %v966 = vadd.f32 %v447, %v965
      %967 = vdwg.mxu0
      %968 = vmatpush.bf16.msra.mxu0 %v788
      %969 = vmatpush.bf16.msra.mxu0 %v783
      %970 = vmatpush.bf16.msra.mxu0 %v778
      %971 = vmatpush.bf16.msra.mxu0 %v773
      %972 = vmatpush.bf16.msra.mxu0 %v768
      %973 = vmatpush.bf16.msra.mxu0 %v763
      %974 = vmatpush.bf16.msra.mxu0 %v758
      %975 = vmatpush.bf16.msra.mxu0 %v753
      %976 = vmatmul.bf16.gmra.mxu0 %v345
      %v977 = vpop.f32.mrf.mxu0
      %v978 = vadd.f32 %v964, %v977
      %v979 = vpop.f32.mrf.mxu0
      %v980 = vadd.f32 %v966, %v979
      %981 = vdwg.mxu0
      %982 = vmatpush.bf16.msra.mxu0 %v749
      %983 = vmatpush.bf16.msra.mxu0 %v744
      %984 = vmatpush.bf16.msra.mxu0 %v739
      %985 = vmatpush.bf16.msra.mxu0 %v734
      %986 = vmatpush.bf16.msra.mxu0 %v729
      %987 = vmatpush.bf16.msra.mxu0 %v724
      %988 = vmatpush.bf16.msra.mxu0 %v719
      %989 = vmatpush.bf16.msra.mxu0 %v714
      %990 = vmatmul.bf16.gmra.mxu0 %v344
      %v991 = vpop.f32.mrf.mxu0
      %v992 = vadd.f32 %v448, %v991
      %v993 = vpop.f32.mrf.mxu0
      %v994 = vadd.f32 %v448, %v993
      %995 = vdwg.mxu0
      %996 = vmatpush.bf16.msra.mxu0 %v789
      %997 = vmatpush.bf16.msra.mxu0 %v784
      %998 = vmatpush.bf16.msra.mxu0 %v779
      %999 = vmatpush.bf16.msra.mxu0 %v774
      %1000 = vmatpush.bf16.msra.mxu0 %v769
      %1001 = vmatpush.bf16.msra.mxu0 %v764
      %1002 = vmatpush.bf16.msra.mxu0 %v759
      %1003 = vmatpush.bf16.msra.mxu0 %v754
      %1004 = vmatmul.bf16.gmra.mxu0 %v345
      %v1005 = vpop.f32.mrf.mxu0
      %v1006 = vadd.f32 %v992, %v1005
      %v1007 = vpop.f32.mrf.mxu0
      %v1008 = vadd.f32 %v994, %v1007
      %1009 = vdwg.mxu0
      %v1010 = vmax.f32 %v894, 0.0
      %v1011 = vmax.f32 %v922, 0.0
      %v1012 = vmax.f32 %v950, 0.0
      %v1013 = vmax.f32 %v978, 0.0
      %v1014 = vmax.f32 %v1006, 0.0
      %v1015 = vmax.f32 %v896, 0.0
      %v1016 = vmax.f32 %v924, 0.0
      %v1017 = vmax.f32 %v952, 0.0
      %v1018 = vmax.f32 %v980, 0.0
      %v1019 = vmax.f32 %v1008, 0.0
      %v1020 = vpack.c.bf16 %v1015, %v1010
      %v1021 = vpack.c.bf16 %v1016, %v1011
      %v1022 = vpack.c.bf16 %v1017, %v1012
      %v1023 = vpack.c.bf16 %v1018, %v1013
      %v1024 = vpack.c.bf16 %v1019, %v1014
      %v1025 = vld [vmem:[%s3] sm:$0xff]
      %v1026 = vld [vmem:[%s3 + $0x8] sm:$0xff]
      %v1027 = vld [vmem:[%s3 + $0x10] sm:$0xff]
      %v1028 = vld [vmem:[%s3 + $0x18] sm:$0xff]
      %v1029 = vld [vmem:[%s3 + $0x20] sm:$0xff]
      %v1030 = vld [vmem:[%s3 + $0x28] sm:$0xff]
      %v1031 = vld [vmem:[%s3 + $0x30] sm:$0xff]
      %v1032 = vld [vmem:[%s3 + $0x38] sm:$0xff]
      %v1033 = vld [vmem:[%s3 + $0x40] sm:$0xff]
      %v1034 = vld [vmem:[%s3 + $0x48] sm:$0xff]
      %v1035 = vld [vmem:[%s3 + $0x50] sm:$0xff]
      %v1036 = vld [vmem:[%s3 + $0x58] sm:$0xff]
      %v1037 = vld [vmem:[%s3 + $0x60] sm:$0xff]
      %v1038 = vld [vmem:[%s3 + $0x68] sm:$0xff]
      %v1039 = vld [vmem:[%s3 + $0x70] sm:$0xff]
      %v1040 = vld [vmem:[%s3 + $0x78] sm:$0xff]
      %v1041 = vld [vmem:[%s3 + $0x80] sm:$0xff]
      %v1042 = vld [vmem:[%s3 + $0x88] sm:$0xff]
      %v1043 = vld [vmem:[%s3 + $0x90] sm:$0xff]
      %v1044 = vld [vmem:[%s3 + $0x98] sm:$0xff]
      %v1045 = vld [vmem:[%s3 + $0xa0] sm:$0xff]
      %v1046 = vld [vmem:[%s3 + $0xa8] sm:$0xff]
      %v1047 = vld [vmem:[%s3 + $0xb0] sm:$0xff]
      %v1048 = vld [vmem:[%s3 + $0xb8] sm:$0xff]
      %v1049 = vld [vmem:[%s3 + $0xc0] sm:$0xff]
      %v1050 = vld [vmem:[%s3 + $0xc8] sm:$0xff]
      %v1051 = vld [vmem:[%s3 + $0xd0] sm:$0xff]
      %v1052 = vld [vmem:[%s3 + $0xd8] sm:$0xff]
      %v1053 = vld [vmem:[%s3 + $0xe0] sm:$0xff]
      %v1054 = vld [vmem:[%s3 + $0xe8] sm:$0xff]
      %v1055 = vld [vmem:[%s3 + $0xf0] sm:$0xff]
      %v1056 = vld [vmem:[%s3 + $0xf8] sm:$0xff]
      %v1057 = vld [vmem:[%s3 + $0x100] sm:$0xff]
      %v1058 = vld [vmem:[%s3 + $0x108] sm:$0xff]
      %v1059 = vld [vmem:[%s3 + $0x110] sm:$0xff]
      %v1060 = vld [vmem:[%s3 + $0x118] sm:$0xff]
      %v1061 = vld [vmem:[%s3 + $0x120] sm:$0xff]
      %v1062 = vld [vmem:[%s3 + $0x128] sm:$0xff]
      %v1063 = vld [vmem:[%s3 + $0x130] sm:$0xff]
      %v1064 = vld [vmem:[%s3 + $0x138] sm:$0xff]
      %v1065 = vld [vmem:[%s3 + $0x140] sm:$0xff]
      %v1066 = vld [vmem:[%s3 + $0x148] sm:$0xff]
      %v1067 = vld [vmem:[%s3 + $0x150] sm:$0xff]
      %v1068 = vld [vmem:[%s3 + $0x158] sm:$0xff]
      %v1069 = vld [vmem:[%s3 + $0x160] sm:$0xff]
      %v1070 = vld [vmem:[%s3 + $0x168] sm:$0xff]
      %v1071 = vld [vmem:[%s3 + $0x170] sm:$0xff]
      %v1072 = vld [vmem:[%s3 + $0x178] sm:$0xff]
      %v1073 = vld [vmem:[%s3 + $0x180] sm:$0xff]
      %v1074 = vld [vmem:[%s3 + $0x188] sm:$0xff]
      %v1075 = vld [vmem:[%s3 + $0x190] sm:$0xff]
      %v1076 = vld [vmem:[%s3 + $0x198] sm:$0xff]
      %v1077 = vld [vmem:[%s3 + $0x1a0] sm:$0xff]
      %v1078 = vld [vmem:[%s3 + $0x1a8] sm:$0xff]
      %v1079 = vld [vmem:[%s3 + $0x1b0] sm:$0xff]
      %v1080 = vld [vmem:[%s3 + $0x1b8] sm:$0xff]
      %v1081 = vld [vmem:[%s3 + $0x1c0] sm:$0xff]
      %v1082 = vld [vmem:[%s3 + $0x1c8] sm:$0xff]
      %v1083 = vld [vmem:[%s3 + $0x1d0] sm:$0xff]
      %v1084 = vld [vmem:[%s3 + $0x1d8] sm:$0xff]
      %v1085 = vld [vmem:[%s3 + $0x1e0] sm:$0xff]
      %v1086 = vld [vmem:[%s3 + $0x1e8] sm:$0xff]
      %v1087 = vld [vmem:[%s3 + $0x1f0] sm:$0xff]
      %v1088 = vld [vmem:[%s3 + $0x1f8] sm:$0xff]
      %v1089 = vld [vmem:[%s3 + $0x200] sm:$0xff]
      %v1090 = vld [vmem:[%s3 + $0x208] sm:$0xff]
      %v1091 = vld [vmem:[%s3 + $0x210] sm:$0xff]
      %v1092 = vld [vmem:[%s3 + $0x218] sm:$0xff]
      %v1093 = vld [vmem:[%s3 + $0x220] sm:$0xff]
      %v1094 = vld [vmem:[%s3 + $0x228] sm:$0xff]
      %v1095 = vld [vmem:[%s3 + $0x230] sm:$0xff]
      %v1096 = vld [vmem:[%s3 + $0x238] sm:$0xff]
      %v1097 = vld [vmem:[%s3 + $0x240] sm:$0xff]
      %v1098 = vld [vmem:[%s3 + $0x248] sm:$0xff]
      %v1099 = vld [vmem:[%s3 + $0x250] sm:$0xff]
      %v1100 = vld [vmem:[%s3 + $0x258] sm:$0xff]
      %v1101 = vld [vmem:[%s3 + $0x260] sm:$0xff]
      %v1102 = vld [vmem:[%s3 + $0x268] sm:$0xff]
      %v1103 = vld [vmem:[%s3 + $0x270] sm:$0xff]
      %v1104 = vld [vmem:[%s3 + $0x278] sm:$0xff]
      %v1105 = vld [vmem:[%s3 + $0x280] sm:$0xff]
      %v1106 = vld [vmem:[%s3 + $0x288] sm:$0xff]
      %v1107 = vld [vmem:[%s3 + $0x290] sm:$0xff]
      %v1108 = vld [vmem:[%s3 + $0x298] sm:$0xff]
      %v1109 = vld [vmem:[%s3 + $0x2a0] sm:$0xff]
      %v1110 = vld [vmem:[%s3 + $0x2a8] sm:$0xff]
      %v1111 = vld [vmem:[%s3 + $0x2b0] sm:$0xff]
      %v1112 = vld [vmem:[%s3 + $0x2b8] sm:$0xff]
      %v1113 = vld [vmem:[%s3 + $0x2c0] sm:$0xff]
      %v1114 = vld [vmem:[%s3 + $0x2c8] sm:$0xff]
      %v1115 = vld [vmem:[%s3 + $0x2d0] sm:$0xff]
      %v1116 = vld [vmem:[%s3 + $0x2d8] sm:$0xff]
      %v1117 = vld [vmem:[%s3 + $0x2e0] sm:$0xff]
      %v1118 = vld [vmem:[%s3 + $0x2e8] sm:$0xff]
      %v1119 = vld [vmem:[%s3 + $0x2f0] sm:$0xff]
      %v1120 = vld [vmem:[%s3 + $0x2f8] sm:$0xff]
      %v1121 = vld [vmem:[%s3 + $0x300] sm:$0xff]
      %v1122 = vld [vmem:[%s3 + $0x308] sm:$0xff]
      %v1123 = vld [vmem:[%s3 + $0x310] sm:$0xff]
      %v1124 = vld [vmem:[%s3 + $0x318] sm:$0xff]
      %v1125 = vld [vmem:[%s3 + $0x320] sm:$0xff]
      %v1126 = vld [vmem:[%s3 + $0x328] sm:$0xff]
      %v1127 = vld [vmem:[%s3 + $0x330] sm:$0xff]
      %v1128 = vld [vmem:[%s3 + $0x338] sm:$0xff]
      %v1129 = vld [vmem:[%s3 + $0x340] sm:$0xff]
      %v1130 = vld [vmem:[%s3 + $0x348] sm:$0xff]
      %v1131 = vld [vmem:[%s3 + $0x350] sm:$0xff]
      %v1132 = vld [vmem:[%s3 + $0x358] sm:$0xff]
      %v1133 = vld [vmem:[%s3 + $0x360] sm:$0xff]
      %v1134 = vld [vmem:[%s3 + $0x368] sm:$0xff]
      %v1135 = vld [vmem:[%s3 + $0x370] sm:$0xff]
      %v1136 = vld [vmem:[%s3 + $0x378] sm:$0xff]
      %v1137 = vld [vmem:[%s3 + $0x380] sm:$0xff]
      %v1138 = vld [vmem:[%s3 + $0x388] sm:$0xff]
      %v1139 = vld [vmem:[%s3 + $0x390] sm:$0xff]
      %v1140 = vld [vmem:[%s3 + $0x398] sm:$0xff]
      %v1141 = vld [vmem:[%s3 + $0x3a0] sm:$0xff]
      %v1142 = vld [vmem:[%s3 + $0x3a8] sm:$0xff]
      %v1143 = vld [vmem:[%s3 + $0x3b0] sm:$0xff]
      %v1144 = vld [vmem:[%s3 + $0x3b8] sm:$0xff]
      %v1145 = vld [vmem:[%s3 + $0x3c0] sm:$0xff]
      %v1146 = vld [vmem:[%s3 + $0x3c8] sm:$0xff]
      %v1147 = vld [vmem:[%s3 + $0x3d0] sm:$0xff]
      %v1148 = vld [vmem:[%s3 + $0x3d8] sm:$0xff]
      %v1149 = vld [vmem:[%s3 + $0x3e0] sm:$0xff]
      %v1150 = vld [vmem:[%s3 + $0x3e8] sm:$0xff]
      %v1151 = vld [vmem:[%s3 + $0x3f0] sm:$0xff]
      %v1152 = vld [vmem:[%s3 + $0x3f8] sm:$0xff]
      %v1153 = vld [vmem:[%s3 + $0x400] sm:$0xff]
      %v1154 = vld [vmem:[%s3 + $0x408] sm:$0xff]
      %v1155 = vld [vmem:[%s3 + $0x410] sm:$0xff]
      %v1156 = vld [vmem:[%s3 + $0x418] sm:$0xff]
      %v1157 = vld [vmem:[%s3 + $0x420] sm:$0xff]
      %v1158 = vld [vmem:[%s3 + $0x428] sm:$0xff]
      %v1159 = vld [vmem:[%s3 + $0x430] sm:$0xff]
      %v1160 = vld [vmem:[%s3 + $0x438] sm:$0xff]
      %v1161 = vld [vmem:[%s3 + $0x440] sm:$0xff]
      %v1162 = vld [vmem:[%s3 + $0x448] sm:$0xff]
      %v1163 = vld [vmem:[%s3 + $0x450] sm:$0xff]
      %v1164 = vld [vmem:[%s3 + $0x458] sm:$0xff]
      %v1165 = vld [vmem:[%s3 + $0x460] sm:$0xff]
      %v1166 = vld [vmem:[%s3 + $0x468] sm:$0xff]
      %v1167 = vld [vmem:[%s3 + $0x470] sm:$0xff]
      %v1168 = vld [vmem:[%s3 + $0x478] sm:$0xff]
      %v1169 = vld [vmem:[%s4] sm:$0xf]
      %v1171 = vperm.slane %v1169, 0
      %v1172 = vperm.slane %v1169, 1
      %v1173 = vperm.slane %v1169, 2
      %v1174 = vperm.slane %v1169, 3
      %v1323 = vunpack.c.l.b16 %v1025
      %v1324 = vunpack.c.h.b16 %v1025
      %v1325 = vunpack.c.l.b16 %v1026
      %v1326 = vunpack.c.h.b16 %v1026
      %v1327 = vunpack.c.l.b16 %v1027
      %v1328 = vunpack.c.h.b16 %v1027
      %v1329 = vunpack.c.l.b16 %v1028
      %v1330 = vunpack.c.h.b16 %v1028
      %v1331 = vunpack.c.l.b16 %v1029
      %v1332 = vunpack.c.h.b16 %v1029
      %v1333 = vunpack.c.l.b16 %v1030
      %v1334 = vunpack.c.h.b16 %v1030
      %v1335 = vunpack.c.l.b16 %v1031
      %v1336 = vunpack.c.h.b16 %v1031
      %v1337 = vunpack.c.l.b16 %v1032
      %v1338 = vunpack.c.h.b16 %v1032
      %v1339 = vunpack.c.l.b16 %v1033
      %v1340 = vunpack.c.h.b16 %v1033
      %v1341 = vunpack.c.l.b16 %v1034
      %v1342 = vunpack.c.h.b16 %v1034
      %v1343 = vunpack.c.l.b16 %v1035
      %v1344 = vunpack.c.h.b16 %v1035
      %v1345 = vunpack.c.l.b16 %v1036
      %v1346 = vunpack.c.h.b16 %v1036
      %v1347 = vunpack.c.l.b16 %v1037
      %v1348 = vunpack.c.h.b16 %v1037
      %v1349 = vunpack.c.l.b16 %v1038
      %v1350 = vunpack.c.h.b16 %v1038
      %v1351 = vunpack.c.l.b16 %v1039
      %v1352 = vunpack.c.h.b16 %v1039
      %v1353 = vunpack.c.l.b16 %v1040
      %v1354 = vunpack.c.h.b16 %v1040
      %v1355 = vunpack.c.l.b16 %v1041
      %v1356 = vunpack.c.h.b16 %v1041
      %v1357 = vunpack.c.l.b16 %v1042
      %v1358 = vunpack.c.h.b16 %v1042
      %v1359 = vunpack.c.l.b16 %v1043
      %v1360 = vunpack.c.h.b16 %v1043
      %v1361 = vunpack.c.l.b16 %v1044
      %v1362 = vunpack.c.h.b16 %v1044
      %v1363 = vunpack.c.l.b16 %v1045
      %v1364 = vunpack.c.h.b16 %v1045
      %v1365 = vunpack.c.l.b16 %v1046
      %v1366 = vunpack.c.h.b16 %v1046
      %v1367 = vunpack.c.l.b16 %v1047
      %v1368 = vunpack.c.h.b16 %v1047
      %v1369 = vunpack.c.l.b16 %v1048
      %v1370 = vunpack.c.h.b16 %v1048
      %v1371 = vunpack.c.l.b16 %v1049
      %v1372 = vunpack.c.h.b16 %v1049
      %v1373 = vunpack.c.l.b16 %v1050
      %v1374 = vunpack.c.h.b16 %v1050
      %v1375 = vunpack.c.l.b16 %v1051
      %v1376 = vunpack.c.h.b16 %v1051
      %v1377 = vunpack.c.l.b16 %v1052
      %v1378 = vunpack.c.h.b16 %v1052
      %v1379 = vunpack.c.l.b16 %v1053
      %v1380 = vunpack.c.h.b16 %v1053
      %v1381 = vunpack.c.l.b16 %v1054
      %v1382 = vunpack.c.h.b16 %v1054
      %v1383 = vunpack.c.l.b16 %v1055
      %v1384 = vunpack.c.h.b16 %v1055
      %v1385 = vunpack.c.l.b16 %v1056
      %v1386 = vunpack.c.h.b16 %v1056
      %v1387 = vunpack.c.l.b16 %v1057
      %v1388 = vunpack.c.h.b16 %v1057
      %v1389 = vunpack.c.l.b16 %v1058
      %v1390 = vunpack.c.h.b16 %v1058
      %v1391 = vunpack.c.l.b16 %v1059
      %v1392 = vunpack.c.h.b16 %v1059
      %v1393 = vunpack.c.l.b16 %v1060
      %v1394 = vunpack.c.h.b16 %v1060
      %v1395 = vunpack.c.l.b16 %v1061
      %v1396 = vunpack.c.h.b16 %v1061
      %v1397 = vunpack.c.l.b16 %v1062
      %v1398 = vunpack.c.h.b16 %v1062
      %v1399 = vunpack.c.l.b16 %v1063
      %v1400 = vunpack.c.h.b16 %v1063
      %v1401 = vunpack.c.l.b16 %v1064
      %v1402 = vunpack.c.h.b16 %v1064
      %v1403 = vunpack.c.l.b16 %v1065
      %v1404 = vunpack.c.h.b16 %v1065
      %v1405 = vunpack.c.l.b16 %v1066
      %v1406 = vunpack.c.h.b16 %v1066
      %v1407 = vunpack.c.l.b16 %v1067
      %v1408 = vunpack.c.h.b16 %v1067
      %v1409 = vunpack.c.l.b16 %v1068
      %v1410 = vunpack.c.h.b16 %v1068
      %v1411 = vunpack.c.l.b16 %v1069
      %v1412 = vunpack.c.h.b16 %v1069
      %v1413 = vunpack.c.l.b16 %v1070
      %v1414 = vunpack.c.h.b16 %v1070
      %v1415 = vunpack.c.l.b16 %v1071
      %v1416 = vunpack.c.h.b16 %v1071
      %v1417 = vunpack.c.l.b16 %v1072
      %v1418 = vunpack.c.h.b16 %v1072
      %v1419 = vunpack.c.l.b16 %v1073
      %v1420 = vunpack.c.h.b16 %v1073
      %v1421 = vunpack.c.l.b16 %v1074
      %v1422 = vunpack.c.h.b16 %v1074
      %v1423 = vunpack.c.l.b16 %v1075
      %v1424 = vunpack.c.h.b16 %v1075
      %v1425 = vunpack.c.l.b16 %v1076
      %v1426 = vunpack.c.h.b16 %v1076
      %v1427 = vunpack.c.l.b16 %v1077
      %v1428 = vunpack.c.h.b16 %v1077
      %v1429 = vunpack.c.l.b16 %v1078
      %v1430 = vunpack.c.h.b16 %v1078
      %v1431 = vunpack.c.l.b16 %v1079
      %v1432 = vunpack.c.h.b16 %v1079
      %v1433 = vunpack.c.l.b16 %v1080
      %v1434 = vunpack.c.h.b16 %v1080
      %v1435 = vunpack.c.l.b16 %v1081
      %v1436 = vunpack.c.h.b16 %v1081
      %v1437 = vunpack.c.l.b16 %v1082
      %v1438 = vunpack.c.h.b16 %v1082
      %v1439 = vunpack.c.l.b16 %v1083
      %v1440 = vunpack.c.h.b16 %v1083
      %v1441 = vunpack.c.l.b16 %v1084
      %v1442 = vunpack.c.h.b16 %v1084
      %v1443 = vunpack.c.l.b16 %v1085
      %v1444 = vunpack.c.h.b16 %v1085
      %v1445 = vunpack.c.l.b16 %v1086
      %v1446 = vunpack.c.h.b16 %v1086
      %v1447 = vunpack.c.l.b16 %v1087
      %v1448 = vunpack.c.h.b16 %v1087
      %v1449 = vunpack.c.l.b16 %v1088
      %v1450 = vunpack.c.h.b16 %v1088
      %v1451 = vunpack.c.l.b16 %v1089
      %v1452 = vunpack.c.h.b16 %v1089
      %v1453 = vunpack.c.l.b16 %v1090
      %v1454 = vunpack.c.h.b16 %v1090
      %v1455 = vunpack.c.l.b16 %v1091
      %v1456 = vunpack.c.h.b16 %v1091
      %v1457 = vunpack.c.l.b16 %v1092
      %v1458 = vunpack.c.h.b16 %v1092
      %v1459 = vunpack.c.l.b16 %v1093
      %v1460 = vunpack.c.h.b16 %v1093
      %v1461 = vunpack.c.l.b16 %v1094
      %v1462 = vunpack.c.h.b16 %v1094
      %v1463 = vunpack.c.l.b16 %v1095
      %v1464 = vunpack.c.h.b16 %v1095
      %v1465 = vunpack.c.l.b16 %v1096
      %v1466 = vunpack.c.h.b16 %v1096
      %v1467 = vunpack.c.l.b16 %v1097
      %v1468 = vunpack.c.h.b16 %v1097
      %v1469 = vunpack.c.l.b16 %v1098
      %v1470 = vunpack.c.h.b16 %v1098
      %v1471 = vunpack.c.l.b16 %v1099
      %v1472 = vunpack.c.h.b16 %v1099
      %v1473 = vunpack.c.l.b16 %v1100
      %v1474 = vunpack.c.h.b16 %v1100
      %v1475 = vunpack.c.l.b16 %v1101
      %v1476 = vunpack.c.h.b16 %v1101
      %v1477 = vunpack.c.l.b16 %v1102
      %v1478 = vunpack.c.h.b16 %v1102
      %v1479 = vunpack.c.l.b16 %v1103
      %v1480 = vunpack.c.h.b16 %v1103
      %v1481 = vunpack.c.l.b16 %v1104
      %v1482 = vunpack.c.h.b16 %v1104
      %v1483 = vunpack.c.l.b16 %v1105
      %v1484 = vunpack.c.h.b16 %v1105
      %v1485 = vunpack.c.l.b16 %v1106
      %v1486 = vunpack.c.h.b16 %v1106
      %v1487 = vunpack.c.l.b16 %v1107
      %v1488 = vunpack.c.h.b16 %v1107
      %v1489 = vunpack.c.l.b16 %v1108
      %v1490 = vunpack.c.h.b16 %v1108
      %v1491 = vunpack.c.l.b16 %v1109
      %v1492 = vunpack.c.h.b16 %v1109
      %v1493 = vunpack.c.l.b16 %v1110
      %v1494 = vunpack.c.h.b16 %v1110
      %v1495 = vunpack.c.l.b16 %v1111
      %v1496 = vunpack.c.h.b16 %v1111
      %v1497 = vunpack.c.l.b16 %v1112
      %v1498 = vunpack.c.h.b16 %v1112
      %v1499 = vunpack.c.l.b16 %v1113
      %v1500 = vunpack.c.h.b16 %v1113
      %v1501 = vunpack.c.l.b16 %v1114
      %v1502 = vunpack.c.h.b16 %v1114
      %v1503 = vunpack.c.l.b16 %v1115
      %v1504 = vunpack.c.h.b16 %v1115
      %v1505 = vunpack.c.l.b16 %v1116
      %v1506 = vunpack.c.h.b16 %v1116
      %v1507 = vunpack.c.l.b16 %v1117
      %v1508 = vunpack.c.h.b16 %v1117
      %v1509 = vunpack.c.l.b16 %v1118
      %v1510 = vunpack.c.h.b16 %v1118
      %v1511 = vunpack.c.l.b16 %v1119
      %v1512 = vunpack.c.h.b16 %v1119
      %v1513 = vunpack.c.l.b16 %v1120
      %v1514 = vunpack.c.h.b16 %v1120
      %v1515 = vunpack.c.l.b16 %v1121
      %v1516 = vunpack.c.h.b16 %v1121
      %v1517 = vunpack.c.l.b16 %v1122
      %v1518 = vunpack.c.h.b16 %v1122
      %v1519 = vunpack.c.l.b16 %v1123
      %v1520 = vunpack.c.h.b16 %v1123
      %v1521 = vunpack.c.l.b16 %v1124
      %v1522 = vunpack.c.h.b16 %v1124
      %v1523 = vunpack.c.l.b16 %v1125
      %v1524 = vunpack.c.h.b16 %v1125
      %v1525 = vunpack.c.l.b16 %v1126
      %v1526 = vunpack.c.h.b16 %v1126
      %v1527 = vunpack.c.l.b16 %v1127
      %v1528 = vunpack.c.h.b16 %v1127
      %v1529 = vunpack.c.l.b16 %v1128
      %v1530 = vunpack.c.h.b16 %v1128
      %v1531 = vunpack.c.l.b16 %v1129
      %v1532 = vunpack.c.h.b16 %v1129
      %v1533 = vunpack.c.l.b16 %v1130
      %v1534 = vunpack.c.h.b16 %v1130
      %v1535 = vunpack.c.l.b16 %v1131
      %v1536 = vunpack.c.h.b16 %v1131
      %v1537 = vunpack.c.l.b16 %v1132
      %v1538 = vunpack.c.h.b16 %v1132
      %v1539 = vunpack.c.l.b16 %v1133
      %v1540 = vunpack.c.h.b16 %v1133
      %v1541 = vunpack.c.l.b16 %v1134
      %v1542 = vunpack.c.h.b16 %v1134
      %v1543 = vunpack.c.l.b16 %v1135
      %v1544 = vunpack.c.h.b16 %v1135
      %v1545 = vunpack.c.l.b16 %v1136
      %v1546 = vunpack.c.h.b16 %v1136
      %v1547 = vunpack.c.l.b16 %v1137
      %v1548 = vunpack.c.h.b16 %v1137
      %v1549 = vunpack.c.l.b16 %v1138
      %v1550 = vunpack.c.h.b16 %v1138
      %v1551 = vunpack.c.l.b16 %v1139
      %v1552 = vunpack.c.h.b16 %v1139
      %v1553 = vunpack.c.l.b16 %v1140
      %v1554 = vunpack.c.h.b16 %v1140
      %v1555 = vunpack.c.l.b16 %v1141
      %v1556 = vunpack.c.h.b16 %v1141
      %v1557 = vunpack.c.l.b16 %v1142
      %v1558 = vunpack.c.h.b16 %v1142
      %v1559 = vunpack.c.l.b16 %v1143
      %v1560 = vunpack.c.h.b16 %v1143
      %v1561 = vunpack.c.l.b16 %v1144
      %v1562 = vunpack.c.h.b16 %v1144
      %v1563 = vunpack.c.l.b16 %v1145
      %v1564 = vunpack.c.h.b16 %v1145
      %v1565 = vunpack.c.l.b16 %v1146
      %v1566 = vunpack.c.h.b16 %v1146
      %v1567 = vunpack.c.l.b16 %v1147
      %v1568 = vunpack.c.h.b16 %v1147
      %v1569 = vunpack.c.l.b16 %v1148
      %v1570 = vunpack.c.h.b16 %v1148
      %v1571 = vunpack.c.l.b16 %v1149
      %v1572 = vunpack.c.h.b16 %v1149
      %v1573 = vunpack.c.l.b16 %v1150
      %v1574 = vunpack.c.h.b16 %v1150
      %v1575 = vunpack.c.l.b16 %v1151
      %v1576 = vunpack.c.h.b16 %v1151
      %v1577 = vunpack.c.l.b16 %v1152
      %v1578 = vunpack.c.h.b16 %v1152
      %v1579 = vunpack.c.l.b16 %v1153
      %v1580 = vunpack.c.h.b16 %v1153
      %v1581 = vunpack.c.l.b16 %v1154
      %v1582 = vunpack.c.h.b16 %v1154
      %v1583 = vunpack.c.l.b16 %v1155
      %v1584 = vunpack.c.h.b16 %v1155
      %v1585 = vunpack.c.l.b16 %v1156
      %v1586 = vunpack.c.h.b16 %v1156
      %v1587 = vunpack.c.l.b16 %v1157
      %v1588 = vunpack.c.h.b16 %v1157
      %v1589 = vunpack.c.l.b16 %v1158
      %v1590 = vunpack.c.h.b16 %v1158
      %v1591 = vunpack.c.l.b16 %v1159
      %v1592 = vunpack.c.h.b16 %v1159
      %v1593 = vunpack.c.l.b16 %v1160
      %v1594 = vunpack.c.h.b16 %v1160
      %v1595 = vunpack.c.l.b16 %v1161
      %v1596 = vunpack.c.h.b16 %v1161
      %v1597 = vunpack.c.l.b16 %v1162
      %v1598 = vunpack.c.h.b16 %v1162
      %v1599 = vunpack.c.l.b16 %v1163
      %v1600 = vunpack.c.h.b16 %v1163
      %v1601 = vunpack.c.l.b16 %v1164
      %v1602 = vunpack.c.h.b16 %v1164
      %v1603 = vunpack.c.l.b16 %v1165
      %v1604 = vunpack.c.h.b16 %v1165
      %v1605 = vunpack.c.l.b16 %v1166
      %v1606 = vunpack.c.h.b16 %v1166
      %v1607 = vunpack.c.l.b16 %v1167
      %v1608 = vunpack.c.h.b16 %v1167
      %v1609 = vunpack.c.l.b16 %v1168
      %v1610 = vunpack.c.h.b16 %v1168
      %v1611 = vpack.c.b16 %v1327, %v1323
      %v1612 = vpack.c.b16 %v1328, %v1324
      %v1613 = vpack.c.b16 %v1329, %v1325
      %v1614 = vpack.c.b16 %v1330, %v1326
      %v1615 = vpack.c.b16 %v1335, %v1331
      %v1616 = vpack.c.b16 %v1336, %v1332
      %v1617 = vpack.c.b16 %v1337, %v1333
      %v1618 = vpack.c.b16 %v1338, %v1334
      %v1619 = vpack.c.b16 %v1343, %v1339
      %v1620 = vpack.c.b16 %v1344, %v1340
      %v1621 = vpack.c.b16 %v1345, %v1341
      %v1622 = vpack.c.b16 %v1346, %v1342
      %v1623 = vpack.c.b16 %v1351, %v1347
      %v1624 = vpack.c.b16 %v1352, %v1348
      %v1625 = vpack.c.b16 %v1353, %v1349
      %v1626 = vpack.c.b16 %v1354, %v1350
      %v1627 = vpack.c.b16 %v1359, %v1355
      %v1628 = vpack.c.b16 %v1360, %v1356
      %v1629 = vpack.c.b16 %v1361, %v1357
      %v1630 = vpack.c.b16 %v1362, %v1358
      %v1631 = vpack.c.b16 %v1367, %v1363
      %v1632 = vpack.c.b16 %v1368, %v1364
      %v1633 = vpack.c.b16 %v1369, %v1365
      %v1634 = vpack.c.b16 %v1370, %v1366
      %v1635 = vpack.c.b16 %v1375, %v1371
      %v1636 = vpack.c.b16 %v1376, %v1372
      %v1637 = vpack.c.b16 %v1377, %v1373
      %v1638 = vpack.c.b16 %v1378, %v1374
      %v1639 = vpack.c.b16 %v1383, %v1379
      %v1640 = vpack.c.b16 %v1384, %v1380
      %v1641 = vpack.c.b16 %v1385, %v1381
      %v1642 = vpack.c.b16 %v1386, %v1382
      %v1643 = vpack.c.b16 %v1391, %v1387
      %v1644 = vpack.c.b16 %v1392, %v1388
      %v1645 = vpack.c.b16 %v1393, %v1389
      %v1646 = vpack.c.b16 %v1394, %v1390
      %v1647 = vpack.c.b16 %v1399, %v1395
      %v1648 = vpack.c.b16 %v1400, %v1396
      %v1649 = vpack.c.b16 %v1401, %v1397
      %v1650 = vpack.c.b16 %v1402, %v1398
      %v1651 = vpack.c.b16 %v1407, %v1403
      %v1652 = vpack.c.b16 %v1408, %v1404
      %v1653 = vpack.c.b16 %v1409, %v1405
      %v1654 = vpack.c.b16 %v1410, %v1406
      %v1655 = vpack.c.b16 %v1415, %v1411
      %v1656 = vpack.c.b16 %v1416, %v1412
      %v1657 = vpack.c.b16 %v1417, %v1413
      %v1658 = vpack.c.b16 %v1418, %v1414
      %v1659 = vpack.c.b16 %v1423, %v1419
      %v1660 = vpack.c.b16 %v1424, %v1420
      %v1661 = vpack.c.b16 %v1425, %v1421
      %v1662 = vpack.c.b16 %v1426, %v1422
      %v1663 = vpack.c.b16 %v1431, %v1427
      %v1664 = vpack.c.b16 %v1432, %v1428
      %v1665 = vpack.c.b16 %v1433, %v1429
      %v1666 = vpack.c.b16 %v1434, %v1430
      %v1667 = vpack.c.b16 %v1439, %v1435
      %v1668 = vpack.c.b16 %v1440, %v1436
      %v1669 = vpack.c.b16 %v1441, %v1437
      %v1670 = vpack.c.b16 %v1442, %v1438
      %v1671 = vpack.c.b16 %v1447, %v1443
      %v1672 = vpack.c.b16 %v1448, %v1444
      %v1673 = vpack.c.b16 %v1449, %v1445
      %v1674 = vpack.c.b16 %v1450, %v1446
      %v1675 = vpack.c.b16 %v1455, %v1451
      %v1676 = vpack.c.b16 %v1456, %v1452
      %v1677 = vpack.c.b16 %v1457, %v1453
      %v1678 = vpack.c.b16 %v1458, %v1454
      %v1679 = vpack.c.b16 %v1463, %v1459
      %v1680 = vpack.c.b16 %v1464, %v1460
      %v1681 = vpack.c.b16 %v1465, %v1461
      %v1682 = vpack.c.b16 %v1466, %v1462
      %v1683 = vpack.c.b16 %v1471, %v1467
      %v1684 = vpack.c.b16 %v1472, %v1468
      %v1685 = vpack.c.b16 %v1473, %v1469
      %v1686 = vpack.c.b16 %v1474, %v1470
      %v1687 = vpack.c.b16 %v1479, %v1475
      %v1688 = vpack.c.b16 %v1480, %v1476
      %v1689 = vpack.c.b16 %v1481, %v1477
      %v1690 = vpack.c.b16 %v1482, %v1478
      %v1691 = vpack.c.b16 %v1487, %v1483
      %v1692 = vpack.c.b16 %v1488, %v1484
      %v1693 = vpack.c.b16 %v1489, %v1485
      %v1694 = vpack.c.b16 %v1490, %v1486
      %v1695 = vpack.c.b16 %v1495, %v1491
      %v1696 = vpack.c.b16 %v1496, %v1492
      %v1697 = vpack.c.b16 %v1497, %v1493
      %v1698 = vpack.c.b16 %v1498, %v1494
      %v1699 = vpack.c.b16 %v1503, %v1499
      %v1700 = vpack.c.b16 %v1504, %v1500
      %v1701 = vpack.c.b16 %v1505, %v1501
      %v1702 = vpack.c.b16 %v1506, %v1502
      %v1703 = vpack.c.b16 %v1511, %v1507
      %v1704 = vpack.c.b16 %v1512, %v1508
      %v1705 = vpack.c.b16 %v1513, %v1509
      %v1706 = vpack.c.b16 %v1514, %v1510
      %v1707 = vpack.c.b16 %v1519, %v1515
      %v1708 = vpack.c.b16 %v1520, %v1516
      %v1709 = vpack.c.b16 %v1521, %v1517
      %v1710 = vpack.c.b16 %v1522, %v1518
      %v1711 = vpack.c.b16 %v1527, %v1523
      %v1712 = vpack.c.b16 %v1528, %v1524
      %v1713 = vpack.c.b16 %v1529, %v1525
      %v1714 = vpack.c.b16 %v1530, %v1526
      %v1715 = vpack.c.b16 %v1535, %v1531
      %v1716 = vpack.c.b16 %v1536, %v1532
      %v1717 = vpack.c.b16 %v1537, %v1533
      %v1718 = vpack.c.b16 %v1538, %v1534
      %v1719 = vpack.c.b16 %v1543, %v1539
      %v1720 = vpack.c.b16 %v1544, %v1540
      %v1721 = vpack.c.b16 %v1545, %v1541
      %v1722 = vpack.c.b16 %v1546, %v1542
      %v1723 = vpack.c.b16 %v1551, %v1547
      %v1724 = vpack.c.b16 %v1552, %v1548
      %v1725 = vpack.c.b16 %v1553, %v1549
      %v1726 = vpack.c.b16 %v1554, %v1550
      %v1727 = vpack.c.b16 %v1559, %v1555
      %v1728 = vpack.c.b16 %v1560, %v1556
      %v1729 = vpack.c.b16 %v1561, %v1557
      %v1730 = vpack.c.b16 %v1562, %v1558
      %v1731 = vpack.c.b16 %v1567, %v1563
      %v1732 = vpack.c.b16 %v1568, %v1564
      %v1733 = vpack.c.b16 %v1569, %v1565
      %v1734 = vpack.c.b16 %v1570, %v1566
      %v1735 = vpack.c.b16 %v1575, %v1571
      %v1736 = vpack.c.b16 %v1576, %v1572
      %v1737 = vpack.c.b16 %v1577, %v1573
      %v1738 = vpack.c.b16 %v1578, %v1574
      %v1739 = vpack.c.b16 %v1583, %v1579
      %v1740 = vpack.c.b16 %v1584, %v1580
      %v1741 = vpack.c.b16 %v1585, %v1581
      %v1742 = vpack.c.b16 %v1586, %v1582
      %v1743 = vpack.c.b16 %v1591, %v1587
      %v1744 = vpack.c.b16 %v1592, %v1588
      %v1745 = vpack.c.b16 %v1593, %v1589
      %v1746 = vpack.c.b16 %v1594, %v1590
      %v1747 = vpack.c.b16 %v1599, %v1595
      %v1748 = vpack.c.b16 %v1600, %v1596
      %v1749 = vpack.c.b16 %v1601, %v1597
      %v1750 = vpack.c.b16 %v1602, %v1598
      %v1751 = vpack.c.b16 %v1607, %v1603
      %v1752 = vpack.c.b16 %v1608, %v1604
      %v1753 = vpack.c.b16 %v1609, %v1605
      %v1754 = vpack.c.b16 %v1610, %v1606
      %vm1899 = vcmask 523264
      %v1901 = vsel %vm1899, %v1024, 0
      %1903 = vmatpush.bf16.msra.mxu0 %v1639
      %1904 = vmatpush.bf16.msra.mxu0 %v1635
      %1905 = vmatpush.bf16.msra.mxu0 %v1631
      %1906 = vmatpush.bf16.msra.mxu0 %v1627
      %1907 = vmatpush.bf16.msra.mxu0 %v1623
      %1908 = vmatpush.bf16.msra.mxu0 %v1619
      %1909 = vmatpush.bf16.msra.mxu0 %v1615
      %1910 = vmatpush.bf16.msra.mxu0 %v1611
      %1911 = vmatmul.bf16.gmra.mxu0 %v1020
      %v1912 = vpop.f32.mrf.mxu0
      %v1913 = vadd.f32 %v1171, %v1912
      %v1914 = vpop.f32.mrf.mxu0
      %v1915 = vadd.f32 %v1171, %v1914
      %1916 = vdwg.mxu0
      %1917 = vmatpush.bf16.msra.mxu0 %v1671
      %1918 = vmatpush.bf16.msra.mxu0 %v1667
      %1919 = vmatpush.bf16.msra.mxu0 %v1663
      %1920 = vmatpush.bf16.msra.mxu0 %v1659
      %1921 = vmatpush.bf16.msra.mxu0 %v1655
      %1922 = vmatpush.bf16.msra.mxu0 %v1651
      %1923 = vmatpush.bf16.msra.mxu0 %v1647
      %1924 = vmatpush.bf16.msra.mxu0 %v1643
      %1925 = vmatmul.bf16.gmra.mxu0 %v1021
      %v1926 = vpop.f32.mrf.mxu0
      %v1927 = vadd.f32 %v1913, %v1926
      %v1928 = vpop.f32.mrf.mxu0
      %v1929 = vadd.f32 %v1915, %v1928
      %1930 = vdwg.mxu0
      %1931 = vmatpush.bf16.msra.mxu0 %v1703
      %1932 = vmatpush.bf16.msra.mxu0 %v1699
      %1933 = vmatpush.bf16.msra.mxu0 %v1695
      %1934 = vmatpush.bf16.msra.mxu0 %v1691
      %1935 = vmatpush.bf16.msra.mxu0 %v1687
      %1936 = vmatpush.bf16.msra.mxu0 %v1683
      %1937 = vmatpush.bf16.msra.mxu0 %v1679
      %1938 = vmatpush.bf16.msra.mxu0 %v1675
      %1939 = vmatmul.bf16.gmra.mxu0 %v1022
      %v1940 = vpop.f32.mrf.mxu0
      %v1941 = vadd.f32 %v1927, %v1940
      %v1942 = vpop.f32.mrf.mxu0
      %v1943 = vadd.f32 %v1929, %v1942
      %1944 = vdwg.mxu0
      %1945 = vmatpush.bf16.msra.mxu0 %v1735
      %1946 = vmatpush.bf16.msra.mxu0 %v1731
      %1947 = vmatpush.bf16.msra.mxu0 %v1727
      %1948 = vmatpush.bf16.msra.mxu0 %v1723
      %1949 = vmatpush.bf16.msra.mxu0 %v1719
      %1950 = vmatpush.bf16.msra.mxu0 %v1715
      %1951 = vmatpush.bf16.msra.mxu0 %v1711
      %1952 = vmatpush.bf16.msra.mxu0 %v1707
      %1953 = vmatmul.bf16.gmra.mxu0 %v1023
      %v1954 = vpop.f32.mrf.mxu0
      %v1955 = vadd.f32 %v1941, %v1954
      %v1956 = vpop.f32.mrf.mxu0
      %v1957 = vadd.f32 %v1943, %v1956
      %1958 = vdwg.mxu0
      %1959 = vmatpush.bf16.msra.mxu0 0
      %1960 = vmatpush.bf16.msra.mxu0 0
      %1961 = vmatpush.bf16.msra.mxu0 0
      %1962 = vmatpush.bf16.msra.mxu0 0
      %1963 = vmatpush.bf16.msra.mxu0 %v1751
      %1964 = vmatpush.bf16.msra.mxu0 %v1747
      %1965 = vmatpush.bf16.msra.mxu0 %v1743
      %1966 = vmatpush.bf16.msra.mxu0 %v1739
      %1967 = vmatmul.bf16.gmra.mxu0 %v1901
      %v1968 = vpop.f32.mrf.mxu0
      %v1969 = vadd.f32 %v1955, %v1968
      %v1970 = vpop.f32.mrf.mxu0
      %v1971 = vadd.f32 %v1957, %v1970
      %1972 = vdwg.mxu0
      %1973 = vmatpush.bf16.msra.mxu0 %v1640
      %1974 = vmatpush.bf16.msra.mxu0 %v1636
      %1975 = vmatpush.bf16.msra.mxu0 %v1632
      %1976 = vmatpush.bf16.msra.mxu0 %v1628
      %1977 = vmatpush.bf16.msra.mxu0 %v1624
      %1978 = vmatpush.bf16.msra.mxu0 %v1620
      %1979 = vmatpush.bf16.msra.mxu0 %v1616
      %1980 = vmatpush.bf16.msra.mxu0 %v1612
      %1981 = vmatmul.bf16.gmra.mxu0 %v1020
      %v1982 = vpop.f32.mrf.mxu0
      %v1983 = vadd.f32 %v1172, %v1982
      %v1984 = vpop.f32.mrf.mxu0
      %v1985 = vadd.f32 %v1172, %v1984
      %1986 = vdwg.mxu0
      %1987 = vmatpush.bf16.msra.mxu0 %v1672
      %1988 = vmatpush.bf16.msra.mxu0 %v1668
      %1989 = vmatpush.bf16.msra.mxu0 %v1664
      %1990 = vmatpush.bf16.msra.mxu0 %v1660
      %1991 = vmatpush.bf16.msra.mxu0 %v1656
      %1992 = vmatpush.bf16.msra.mxu0 %v1652
      %1993 = vmatpush.bf16.msra.mxu0 %v1648
      %1994 = vmatpush.bf16.msra.mxu0 %v1644
      %1995 = vmatmul.bf16.gmra.mxu0 %v1021
      %v1996 = vpop.f32.mrf.mxu0
      %v1997 = vadd.f32 %v1983, %v1996
      %v1998 = vpop.f32.mrf.mxu0
      %v1999 = vadd.f32 %v1985, %v1998
      %2000 = vdwg.mxu0
      %2001 = vmatpush.bf16.msra.mxu0 %v1704
      %2002 = vmatpush.bf16.msra.mxu0 %v1700
      %2003 = vmatpush.bf16.msra.mxu0 %v1696
      %2004 = vmatpush.bf16.msra.mxu0 %v1692
      %2005 = vmatpush.bf16.msra.mxu0 %v1688
      %2006 = vmatpush.bf16.msra.mxu0 %v1684
      %2007 = vmatpush.bf16.msra.mxu0 %v1680
      %2008 = vmatpush.bf16.msra.mxu0 %v1676
      %2009 = vmatmul.bf16.gmra.mxu0 %v1022
      %v2010 = vpop.f32.mrf.mxu0
      %v2011 = vadd.f32 %v1997, %v2010
      %v2012 = vpop.f32.mrf.mxu0
      %v2013 = vadd.f32 %v1999, %v2012
      %2014 = vdwg.mxu0
      %2015 = vmatpush.bf16.msra.mxu0 %v1736
      %2016 = vmatpush.bf16.msra.mxu0 %v1732
      %2017 = vmatpush.bf16.msra.mxu0 %v1728
      %2018 = vmatpush.bf16.msra.mxu0 %v1724
      %2019 = vmatpush.bf16.msra.mxu0 %v1720
      %2020 = vmatpush.bf16.msra.mxu0 %v1716
      %2021 = vmatpush.bf16.msra.mxu0 %v1712
      %2022 = vmatpush.bf16.msra.mxu0 %v1708
      %2023 = vmatmul.bf16.gmra.mxu0 %v1023
      %v2024 = vpop.f32.mrf.mxu0
      %v2025 = vadd.f32 %v2011, %v2024
      %v2026 = vpop.f32.mrf.mxu0
      %v2027 = vadd.f32 %v2013, %v2026
      %2028 = vdwg.mxu0
      %2029 = vmatpush.bf16.msra.mxu0 0
      %2030 = vmatpush.bf16.msra.mxu0 0
      %2031 = vmatpush.bf16.msra.mxu0 0
      %2032 = vmatpush.bf16.msra.mxu0 0
      %2033 = vmatpush.bf16.msra.mxu0 %v1752
      %2034 = vmatpush.bf16.msra.mxu0 %v1748
      %2035 = vmatpush.bf16.msra.mxu0 %v1744
      %2036 = vmatpush.bf16.msra.mxu0 %v1740
      %2037 = vmatmul.bf16.gmra.mxu0 %v1901
      %v2038 = vpop.f32.mrf.mxu0
      %v2039 = vadd.f32 %v2025, %v2038
      %v2040 = vpop.f32.mrf.mxu0
      %v2041 = vadd.f32 %v2027, %v2040
      %2042 = vdwg.mxu0
      %2043 = vmatpush.bf16.msra.mxu0 %v1641
      %2044 = vmatpush.bf16.msra.mxu0 %v1637
      %2045 = vmatpush.bf16.msra.mxu0 %v1633
      %2046 = vmatpush.bf16.msra.mxu0 %v1629
      %2047 = vmatpush.bf16.msra.mxu0 %v1625
      %2048 = vmatpush.bf16.msra.mxu0 %v1621
      %2049 = vmatpush.bf16.msra.mxu0 %v1617
      %2050 = vmatpush.bf16.msra.mxu0 %v1613
      %2051 = vmatmul.bf16.gmra.mxu0 %v1020
      %v2052 = vpop.f32.mrf.mxu0
      %v2053 = vadd.f32 %v1173, %v2052
      %v2054 = vpop.f32.mrf.mxu0
      %v2055 = vadd.f32 %v1173, %v2054
      %2056 = vdwg.mxu0
      %2057 = vmatpush.bf16.msra.mxu0 %v1673
      %2058 = vmatpush.bf16.msra.mxu0 %v1669
      %2059 = vmatpush.bf16.msra.mxu0 %v1665
      %2060 = vmatpush.bf16.msra.mxu0 %v1661
      %2061 = vmatpush.bf16.msra.mxu0 %v1657
      %2062 = vmatpush.bf16.msra.mxu0 %v1653
      %2063 = vmatpush.bf16.msra.mxu0 %v1649
      %2064 = vmatpush.bf16.msra.mxu0 %v1645
      %2065 = vmatmul.bf16.gmra.mxu0 %v1021
      %v2066 = vpop.f32.mrf.mxu0
      %v2067 = vadd.f32 %v2053, %v2066
      %v2068 = vpop.f32.mrf.mxu0
      %v2069 = vadd.f32 %v2055, %v2068
      %2070 = vdwg.mxu0
      %2071 = vmatpush.bf16.msra.mxu0 %v1705
      %2072 = vmatpush.bf16.msra.mxu0 %v1701
      %2073 = vmatpush.bf16.msra.mxu0 %v1697
      %2074 = vmatpush.bf16.msra.mxu0 %v1693
      %2075 = vmatpush.bf16.msra.mxu0 %v1689
      %2076 = vmatpush.bf16.msra.mxu0 %v1685
      %2077 = vmatpush.bf16.msra.mxu0 %v1681
      %2078 = vmatpush.bf16.msra.mxu0 %v1677
      %2079 = vmatmul.bf16.gmra.mxu0 %v1022
      %v2080 = vpop.f32.mrf.mxu0
      %v2081 = vadd.f32 %v2067, %v2080
      %v2082 = vpop.f32.mrf.mxu0
      %v2083 = vadd.f32 %v2069, %v2082
      %2084 = vdwg.mxu0
      %2085 = vmatpush.bf16.msra.mxu0 %v1737
      %2086 = vmatpush.bf16.msra.mxu0 %v1733
      %2087 = vmatpush.bf16.msra.mxu0 %v1729
      %2088 = vmatpush.bf16.msra.mxu0 %v1725
      %2089 = vmatpush.bf16.msra.mxu0 %v1721
      %2090 = vmatpush.bf16.msra.mxu0 %v1717
      %2091 = vmatpush.bf16.msra.mxu0 %v1713
      %2092 = vmatpush.bf16.msra.mxu0 %v1709
      %2093 = vmatmul.bf16.gmra.mxu0 %v1023
      %v2094 = vpop.f32.mrf.mxu0
      %v2095 = vadd.f32 %v2081, %v2094
      %v2096 = vpop.f32.mrf.mxu0
      %v2097 = vadd.f32 %v2083, %v2096
      %2098 = vdwg.mxu0
      %2099 = vmatpush.bf16.msra.mxu0 0
      %2100 = vmatpush.bf16.msra.mxu0 0
      %2101 = vmatpush.bf16.msra.mxu0 0
      %2102 = vmatpush.bf16.msra.mxu0 0
      %2103 = vmatpush.bf16.msra.mxu0 %v1753
      %2104 = vmatpush.bf16.msra.mxu0 %v1749
      %2105 = vmatpush.bf16.msra.mxu0 %v1745
      %2106 = vmatpush.bf16.msra.mxu0 %v1741
      %2107 = vmatmul.bf16.gmra.mxu0 %v1901
      %v2108 = vpop.f32.mrf.mxu0
      %v2109 = vadd.f32 %v2095, %v2108
      %v2110 = vpop.f32.mrf.mxu0
      %v2111 = vadd.f32 %v2097, %v2110
      %2112 = vdwg.mxu0
      %2113 = vmatpush.bf16.msra.mxu0 %v1642
      %2114 = vmatpush.bf16.msra.mxu0 %v1638
      %2115 = vmatpush.bf16.msra.mxu0 %v1634
      %2116 = vmatpush.bf16.msra.mxu0 %v1630
      %2117 = vmatpush.bf16.msra.mxu0 %v1626
      %2118 = vmatpush.bf16.msra.mxu0 %v1622
      %2119 = vmatpush.bf16.msra.mxu0 %v1618
      %2120 = vmatpush.bf16.msra.mxu0 %v1614
      %2121 = vmatmul.bf16.gmra.mxu0 %v1020
      %v2122 = vpop.f32.mrf.mxu0
      %v2123 = vadd.f32 %v1174, %v2122
      %v2124 = vpop.f32.mrf.mxu0
      %v2125 = vadd.f32 %v1174, %v2124
      %2126 = vdwg.mxu0
      %2127 = vmatpush.bf16.msra.mxu0 %v1674
      %2128 = vmatpush.bf16.msra.mxu0 %v1670
      %2129 = vmatpush.bf16.msra.mxu0 %v1666
      %2130 = vmatpush.bf16.msra.mxu0 %v1662
      %2131 = vmatpush.bf16.msra.mxu0 %v1658
      %2132 = vmatpush.bf16.msra.mxu0 %v1654
      %2133 = vmatpush.bf16.msra.mxu0 %v1650
      %2134 = vmatpush.bf16.msra.mxu0 %v1646
      %2135 = vmatmul.bf16.gmra.mxu0 %v1021
      %v2136 = vpop.f32.mrf.mxu0
      %v2137 = vadd.f32 %v2123, %v2136
      %v2138 = vpop.f32.mrf.mxu0
      %v2139 = vadd.f32 %v2125, %v2138
      %2140 = vdwg.mxu0
      %2141 = vmatpush.bf16.msra.mxu0 %v1706
      %2142 = vmatpush.bf16.msra.mxu0 %v1702
      %2143 = vmatpush.bf16.msra.mxu0 %v1698
      %2144 = vmatpush.bf16.msra.mxu0 %v1694
      %2145 = vmatpush.bf16.msra.mxu0 %v1690
      %2146 = vmatpush.bf16.msra.mxu0 %v1686
      %2147 = vmatpush.bf16.msra.mxu0 %v1682
      %2148 = vmatpush.bf16.msra.mxu0 %v1678
      %2149 = vmatmul.bf16.gmra.mxu0 %v1022
      %v2150 = vpop.f32.mrf.mxu0
      %v2151 = vadd.f32 %v2137, %v2150
      %v2152 = vpop.f32.mrf.mxu0
      %v2153 = vadd.f32 %v2139, %v2152
      %2154 = vdwg.mxu0
      %2155 = vmatpush.bf16.msra.mxu0 %v1738
      %2156 = vmatpush.bf16.msra.mxu0 %v1734
      %2157 = vmatpush.bf16.msra.mxu0 %v1730
      %2158 = vmatpush.bf16.msra.mxu0 %v1726
      %2159 = vmatpush.bf16.msra.mxu0 %v1722
      %2160 = vmatpush.bf16.msra.mxu0 %v1718
      %2161 = vmatpush.bf16.msra.mxu0 %v1714
      %2162 = vmatpush.bf16.msra.mxu0 %v1710
      %2163 = vmatmul.bf16.gmra.mxu0 %v1023
      %v2164 = vpop.f32.mrf.mxu0
      %v2165 = vadd.f32 %v2151, %v2164
      %v2166 = vpop.f32.mrf.mxu0
      %v2167 = vadd.f32 %v2153, %v2166
      %2168 = vdwg.mxu0
      %2169 = vmatpush.bf16.msra.mxu0 0
      %2170 = vmatpush.bf16.msra.mxu0 0
      %2171 = vmatpush.bf16.msra.mxu0 0
      %2172 = vmatpush.bf16.msra.mxu0 0
      %2173 = vmatpush.bf16.msra.mxu0 %v1754
      %2174 = vmatpush.bf16.msra.mxu0 %v1750
      %2175 = vmatpush.bf16.msra.mxu0 %v1746
      %2176 = vmatpush.bf16.msra.mxu0 %v1742
      %2177 = vmatmul.bf16.gmra.mxu0 %v1901
      %v2178 = vpop.f32.mrf.mxu0
      %v2179 = vadd.f32 %v2165, %v2178
      %v2180 = vpop.f32.mrf.mxu0
      %v2181 = vadd.f32 %v2167, %v2180
      %2182 = vdwg.mxu0
      %v2183 = vmax.f32 %v1969, 0.0
      %v2184 = vmax.f32 %v2039, 0.0
      %v2185 = vmax.f32 %v2109, 0.0
      %v2186 = vmax.f32 %v2179, 0.0
      %v2187 = vmax.f32 %v1971, 0.0
      %v2188 = vmax.f32 %v2041, 0.0
      %v2189 = vmax.f32 %v2111, 0.0
      %v2190 = vmax.f32 %v2181, 0.0
      %v2191 = vpack.c.bf16 %v2187, %v2183
      %v2192 = vpack.c.bf16 %v2188, %v2184
      %v2193 = vpack.c.bf16 %v2189, %v2185
      %v2194 = vpack.c.bf16 %v2190, %v2186
      %v2195 = vld [vmem:[%s5] sm:$0xf]
      %v2196 = vld [vmem:[%s5 + $0x4] sm:$0xf]
      %v2197 = vld [vmem:[%s5 + $0x8] sm:$0xf]
      %v2198 = vld [vmem:[%s5 + $0xc] sm:$0xf]
      %v2199 = vld [vmem:[%s5 + $0x10] sm:$0xf]
      %v2200 = vld [vmem:[%s5 + $0x14] sm:$0xf]
      %v2201 = vld [vmem:[%s5 + $0x18] sm:$0xf]
      %v2202 = vld [vmem:[%s5 + $0x1c] sm:$0xf]
      %v2203 = vld [vmem:[%s5 + $0x20] sm:$0xf]
      %v2204 = vld [vmem:[%s5 + $0x24] sm:$0xf]
      %v2205 = vld [vmem:[%s5 + $0x28] sm:$0xf]
      %v2206 = vld [vmem:[%s5 + $0x2c] sm:$0xf]
      %v2207 = vld [vmem:[%s5 + $0x30] sm:$0xf]
      %v2208 = vld [vmem:[%s5 + $0x34] sm:$0xf]
      %v2209 = vld [vmem:[%s5 + $0x38] sm:$0xf]
      %v2210 = vld [vmem:[%s5 + $0x3c] sm:$0xf]
      %v2211 = vld [vmem:[%s5 + $0x40] sm:$0xf]
      %v2212 = vld [vmem:[%s5 + $0x44] sm:$0xf]
      %v2213 = vld [vmem:[%s5 + $0x48] sm:$0xf]
      %v2214 = vld [vmem:[%s5 + $0x4c] sm:$0xf]
      %v2215 = vld [vmem:[%s5 + $0x50] sm:$0xf]
      %v2216 = vld [vmem:[%s5 + $0x54] sm:$0xf]
      %v2217 = vld [vmem:[%s5 + $0x58] sm:$0xf]
      %v2218 = vld [vmem:[%s5 + $0x5c] sm:$0xf]
      %v2219 = vld [vmem:[%s5 + $0x60] sm:$0xf]
      %v2220 = vld [vmem:[%s5 + $0x64] sm:$0xf]
      %v2221 = vld [vmem:[%s5 + $0x68] sm:$0xf]
      %v2222 = vld [vmem:[%s5 + $0x6c] sm:$0xf]
      %v2223 = vld [vmem:[%s5 + $0x70] sm:$0xf]
      %v2224 = vld [vmem:[%s5 + $0x74] sm:$0xf]
      %v2225 = vld [vmem:[%s5 + $0x78] sm:$0xf]
      %v2226 = vld [vmem:[%s5 + $0x7c] sm:$0xf]
      %v2227 = vld [vmem:[%s5 + $0x80] sm:$0xf]
      %v2228 = vld [vmem:[%s5 + $0x84] sm:$0xf]
      %v2229 = vld [vmem:[%s5 + $0x88] sm:$0xf]
      %v2230 = vld [vmem:[%s5 + $0x8c] sm:$0xf]
      %v2231 = vld [vmem:[%s5 + $0x90] sm:$0xf]
      %v2232 = vld [vmem:[%s5 + $0x94] sm:$0xf]
      %v2233 = vld [vmem:[%s5 + $0x98] sm:$0xf]
      %v2234 = vld [vmem:[%s5 + $0x9c] sm:$0xf]
      %v2235 = vld [vmem:[%s5 + $0xa0] sm:$0xf]
      %v2236 = vld [vmem:[%s5 + $0xa4] sm:$0xf]
      %v2237 = vld [vmem:[%s5 + $0xa8] sm:$0xf]
      %v2238 = vld [vmem:[%s5 + $0xac] sm:$0xf]
      %v2239 = vld [vmem:[%s5 + $0xb0] sm:$0xf]
      %v2240 = vld [vmem:[%s5 + $0xb4] sm:$0xf]
      %v2241 = vld [vmem:[%s5 + $0xb8] sm:$0xf]
      %v2242 = vld [vmem:[%s5 + $0xbc] sm:$0xf]
      %v2243 = vld [vmem:[%s5 + $0xc0] sm:$0xf]
      %v2244 = vld [vmem:[%s5 + $0xc4] sm:$0xf]
      %v2245 = vld [vmem:[%s5 + $0xc8] sm:$0xf]
      %v2246 = vld [vmem:[%s5 + $0xcc] sm:$0xf]
      %v2247 = vld [vmem:[%s5 + $0xd0] sm:$0xf]
      %v2248 = vld [vmem:[%s5 + $0xd4] sm:$0xf]
      %v2249 = vld [vmem:[%s5 + $0xd8] sm:$0xf]
      %v2250 = vld [vmem:[%s5 + $0xdc] sm:$0xf]
      %v2251 = vld [vmem:[%s5 + $0xe0] sm:$0xf]
      %v2252 = vld [vmem:[%s5 + $0xe4] sm:$0xf]
      %v2253 = vld [vmem:[%s5 + $0xe8] sm:$0xf]
      %v2254 = vld [vmem:[%s5 + $0xec] sm:$0xf]
      %v2255 = vld [vmem:[%s5 + $0xf0] sm:$0xf]
      %v2256 = vld [vmem:[%s5 + $0xf4] sm:$0xf]
      %v2257 = vld [vmem:[%s5 + $0xf8] sm:$0xf]
      %v2258 = vld [vmem:[%s5 + $0xfc] sm:$0xf]
      %v2259 = vld [vmem:[%s6] sm:$0x1]
      %v2261 = vperm.slane %v2259, 0
      %v2327 = vunpack.c.l.b16 %v2195
      %v2328 = vunpack.c.l.b16 %v2196
      %v2329 = vunpack.c.l.b16 %v2197
      %v2330 = vunpack.c.l.b16 %v2198
      %v2331 = vunpack.c.l.b16 %v2199
      %v2332 = vunpack.c.l.b16 %v2200
      %v2333 = vunpack.c.l.b16 %v2201
      %v2334 = vunpack.c.l.b16 %v2202
      %v2335 = vunpack.c.l.b16 %v2203
      %v2336 = vunpack.c.l.b16 %v2204
      %v2337 = vunpack.c.l.b16 %v2205
      %v2338 = vunpack.c.l.b16 %v2206
      %v2339 = vunpack.c.l.b16 %v2207
      %v2340 = vunpack.c.l.b16 %v2208
      %v2341 = vunpack.c.l.b16 %v2209
      %v2342 = vunpack.c.l.b16 %v2210
      %v2343 = vunpack.c.l.b16 %v2211
      %v2344 = vunpack.c.l.b16 %v2212
      %v2345 = vunpack.c.l.b16 %v2213
      %v2346 = vunpack.c.l.b16 %v2214
      %v2347 = vunpack.c.l.b16 %v2215
      %v2348 = vunpack.c.l.b16 %v2216
      %v2349 = vunpack.c.l.b16 %v2217
      %v2350 = vunpack.c.l.b16 %v2218
      %v2351 = vunpack.c.l.b16 %v2219
      %v2352 = vunpack.c.l.b16 %v2220
      %v2353 = vunpack.c.l.b16 %v2221
      %v2354 = vunpack.c.l.b16 %v2222
      %v2355 = vunpack.c.l.b16 %v2223
      %v2356 = vunpack.c.l.b16 %v2224
      %v2357 = vunpack.c.l.b16 %v2225
      %v2358 = vunpack.c.l.b16 %v2226
      %v2359 = vunpack.c.l.b16 %v2227
      %v2360 = vunpack.c.l.b16 %v2228
      %v2361 = vunpack.c.l.b16 %v2229
      %v2362 = vunpack.c.l.b16 %v2230
      %v2363 = vunpack.c.l.b16 %v2231
      %v2364 = vunpack.c.l.b16 %v2232
      %v2365 = vunpack.c.l.b16 %v2233
      %v2366 = vunpack.c.l.b16 %v2234
      %v2367 = vunpack.c.l.b16 %v2235
      %v2368 = vunpack.c.l.b16 %v2236
      %v2369 = vunpack.c.l.b16 %v2237
      %v2370 = vunpack.c.l.b16 %v2238
      %v2371 = vunpack.c.l.b16 %v2239
      %v2372 = vunpack.c.l.b16 %v2240
      %v2373 = vunpack.c.l.b16 %v2241
      %v2374 = vunpack.c.l.b16 %v2242
      %v2375 = vunpack.c.l.b16 %v2243
      %v2376 = vunpack.c.l.b16 %v2244
      %v2377 = vunpack.c.l.b16 %v2245
      %v2378 = vunpack.c.l.b16 %v2246
      %v2379 = vunpack.c.l.b16 %v2247
      %v2380 = vunpack.c.l.b16 %v2248
      %v2381 = vunpack.c.l.b16 %v2249
      %v2382 = vunpack.c.l.b16 %v2250
      %v2383 = vunpack.c.l.b16 %v2251
      %v2384 = vunpack.c.l.b16 %v2252
      %v2385 = vunpack.c.l.b16 %v2253
      %v2386 = vunpack.c.l.b16 %v2254
      %v2387 = vunpack.c.l.b16 %v2255
      %v2388 = vunpack.c.l.b16 %v2256
      %v2389 = vunpack.c.l.b16 %v2257
      %v2390 = vunpack.c.l.b16 %v2258
      %v2391 = vpack.c.b16 %v2328, %v2327
      %v2392 = vpack.c.b16 %v2330, %v2329
      %v2393 = vpack.c.b16 %v2332, %v2331
      %v2394 = vpack.c.b16 %v2334, %v2333
      %v2395 = vpack.c.b16 %v2336, %v2335
      %v2396 = vpack.c.b16 %v2338, %v2337
      %v2397 = vpack.c.b16 %v2340, %v2339
      %v2398 = vpack.c.b16 %v2342, %v2341
      %v2399 = vpack.c.b16 %v2344, %v2343
      %v2400 = vpack.c.b16 %v2346, %v2345
      %v2401 = vpack.c.b16 %v2348, %v2347
      %v2402 = vpack.c.b16 %v2350, %v2349
      %v2403 = vpack.c.b16 %v2352, %v2351
      %v2404 = vpack.c.b16 %v2354, %v2353
      %v2405 = vpack.c.b16 %v2356, %v2355
      %v2406 = vpack.c.b16 %v2358, %v2357
      %v2407 = vpack.c.b16 %v2360, %v2359
      %v2408 = vpack.c.b16 %v2362, %v2361
      %v2409 = vpack.c.b16 %v2364, %v2363
      %v2410 = vpack.c.b16 %v2366, %v2365
      %v2411 = vpack.c.b16 %v2368, %v2367
      %v2412 = vpack.c.b16 %v2370, %v2369
      %v2413 = vpack.c.b16 %v2372, %v2371
      %v2414 = vpack.c.b16 %v2374, %v2373
      %v2415 = vpack.c.b16 %v2376, %v2375
      %v2416 = vpack.c.b16 %v2378, %v2377
      %v2417 = vpack.c.b16 %v2380, %v2379
      %v2418 = vpack.c.b16 %v2382, %v2381
      %v2419 = vpack.c.b16 %v2384, %v2383
      %v2420 = vpack.c.b16 %v2386, %v2385
      %v2421 = vpack.c.b16 %v2388, %v2387
      %v2422 = vpack.c.b16 %v2390, %v2389
      %2455 = vmatpush.bf16.msra.mxu0 %v2398
      %2456 = vmatpush.bf16.msra.mxu0 %v2397
      %2457 = vmatpush.bf16.msra.mxu0 %v2396
      %2458 = vmatpush.bf16.msra.mxu0 %v2395
      %2459 = vmatpush.bf16.msra.mxu0 %v2394
      %2460 = vmatpush.bf16.msra.mxu0 %v2393
      %2461 = vmatpush.bf16.msra.mxu0 %v2392
      %2462 = vmatpush.bf16.msra.mxu0 %v2391
      %2463 = vmatmul.bf16.gmra.mxu0 %v2191
      %v2464 = vpop.f32.mrf.mxu0
      %v2465 = vadd.f32 %v2261, %v2464
      %v2466 = vpop.f32.mrf.mxu0
      %v2467 = vadd.f32 %v2261, %v2466
      %2468 = vdwg.mxu0
      %2469 = vmatpush.bf16.msra.mxu0 %v2406
      %2470 = vmatpush.bf16.msra.mxu0 %v2405
      %2471 = vmatpush.bf16.msra.mxu0 %v2404
      %2472 = vmatpush.bf16.msra.mxu0 %v2403
      %2473 = vmatpush.bf16.msra.mxu0 %v2402
      %2474 = vmatpush.bf16.msra.mxu0 %v2401
      %2475 = vmatpush.bf16.msra.mxu0 %v2400
      %2476 = vmatpush.bf16.msra.mxu0 %v2399
      %2477 = vmatmul.bf16.gmra.mxu0 %v2192
      %v2478 = vpop.f32.mrf.mxu0
      %v2479 = vadd.f32 %v2465, %v2478
      %v2480 = vpop.f32.mrf.mxu0
      %v2481 = vadd.f32 %v2467, %v2480
      %2482 = vdwg.mxu0
      %2483 = vmatpush.bf16.msra.mxu0 %v2414
      %2484 = vmatpush.bf16.msra.mxu0 %v2413
      %2485 = vmatpush.bf16.msra.mxu0 %v2412
      %2486 = vmatpush.bf16.msra.mxu0 %v2411
      %2487 = vmatpush.bf16.msra.mxu0 %v2410
      %2488 = vmatpush.bf16.msra.mxu0 %v2409
      %2489 = vmatpush.bf16.msra.mxu0 %v2408
      %2490 = vmatpush.bf16.msra.mxu0 %v2407
      %2491 = vmatmul.bf16.gmra.mxu0 %v2193
      %v2492 = vpop.f32.mrf.mxu0
      %v2493 = vadd.f32 %v2479, %v2492
      %v2494 = vpop.f32.mrf.mxu0
      %v2495 = vadd.f32 %v2481, %v2494
      %2496 = vdwg.mxu0
      %2497 = vmatpush.bf16.msra.mxu0 %v2422
      %2498 = vmatpush.bf16.msra.mxu0 %v2421
      %2499 = vmatpush.bf16.msra.mxu0 %v2420
      %2500 = vmatpush.bf16.msra.mxu0 %v2419
      %2501 = vmatpush.bf16.msra.mxu0 %v2418
      %2502 = vmatpush.bf16.msra.mxu0 %v2417
      %2503 = vmatpush.bf16.msra.mxu0 %v2416
      %2504 = vmatpush.bf16.msra.mxu0 %v2415
      %2505 = vmatmul.bf16.gmra.mxu0 %v2194
      %v2506 = vpop.f32.mrf.mxu0
      %v2507 = vadd.f32 %v2493, %v2506
      %v2508 = vpop.f32.mrf.mxu0
      %v2509 = vadd.f32 %v2495, %v2508
      %2510 = vdwg.mxu0
      %v2511 = vmax.f32 %v2507, 0.0
      %v2512 = vmax.f32 %v2509, 0.0
      %v2513 = vpack.c.bf16 %v2512, %v2511
      %v2514 = vld [vmem:[%s7] sm:$0xf]
      %v2515 = vld [vmem:[%s7 + $0x4] sm:$0xf]
      %v2516 = vld [vmem:[%s7 + $0x8] sm:$0xf]
      %v2517 = vld [vmem:[%s7 + $0xc] sm:$0xf]
      %v2518 = vld [vmem:[%s7 + $0x10] sm:$0xf]
      %v2519 = vld [vmem:[%s7 + $0x14] sm:$0xf]
      %v2520 = vld [vmem:[%s7 + $0x18] sm:$0xf]
      %v2521 = vld [vmem:[%s7 + $0x1c] sm:$0xf]
      %v2522 = vld [vmem:[%s8] sm:$0x1]
      %v2524 = vperm.slane %v2522, 0
      %v2534 = vunpack.c.l.b16 %v2514
      %v2535 = vunpack.c.l.b16 %v2515
      %v2536 = vunpack.c.l.b16 %v2516
      %v2537 = vunpack.c.l.b16 %v2517
      %v2538 = vunpack.c.l.b16 %v2518
      %v2539 = vunpack.c.l.b16 %v2519
      %v2540 = vunpack.c.l.b16 %v2520
      %v2541 = vunpack.c.l.b16 %v2521
      %v2542 = vpack.c.b16 %v2535, %v2534
      %v2543 = vpack.c.b16 %v2537, %v2536
      %v2544 = vpack.c.b16 %v2539, %v2538
      %v2545 = vpack.c.b16 %v2541, %v2540
      %v2551 = vsel %vm1899, %v2513, 0
      %2553 = vmatpush.bf16.msra.mxu0 0
      %2554 = vmatpush.bf16.msra.mxu0 0
      %2555 = vmatpush.bf16.msra.mxu0 0
      %2556 = vmatpush.bf16.msra.mxu0 0
      %2557 = vmatpush.bf16.msra.mxu0 %v2545
      %2558 = vmatpush.bf16.msra.mxu0 %v2544
      %2559 = vmatpush.bf16.msra.mxu0 %v2543
      %2560 = vmatpush.bf16.msra.mxu0 %v2542
      %2561 = vmatmul.bf16.gmra.mxu0 %v2551
      %v2562 = vpop.f32.mrf.mxu0
      %v2563 = vadd.f32 %v2524, %v2562
      %v2564 = vpop.f32.mrf.mxu0
      %v2565 = vadd.f32 %v2524, %v2564
      %2566 = vdwg.mxu0
      %vm2567 = vcmask 64512
      %2568 = vst.msk [vmem:[%s337] sm:$0xff] %vm2567, %v2563
      %2569 = vst.msk [vmem:[%s337 + $0x8] sm:$0xff] %vm2567, %v2565
      %s2570 = smul.u32 2, %s20
      %p2571 = scmp.lt.s32.totalorder %s2570, 3
      %s2572 = scalar_select %p2571, %s2570, 3
      %s2573 = smul.addr %s2572, 8
      %s2574 = scalar_lea.vmem %s9, %s2573
      // Predicated region
      $region57: #{actor_critic_forward.1} parent=55 // pred_check
        %p2575 = pneg %p232
      $region58: #{actor_critic_forward.1} parent=55 // pred_check_branch
        %2577 = sbr.rel (%p2575) target = $region60
      $region59: #{actor_critic_forward.1} parent=55 // pred_region
        %s2578 = smul.u32 2, %s20
      $region60: #{actor_critic_forward.1} parent=55 // pred_fallthru
        _
    $region56: #{actor_critic_forward.1} parent=5 // pred_fallthru
      _
    %p2579 = scmp.le.s32.totalorder 2, %s15
    // Predicated region
    $region61: #{actor_critic_forward.1} parent=5 // pred_check
      %p2580 = pneg %p2579
    $region62: #{actor_critic_forward.1} parent=5 // pred_check_branch
      %2582 = sbr.rel (%p2580) target = $region64
    $region63: #{actor_critic_forward.1} parent=5 // pred_region
      %s2583 = ssub.s32 %s15, 2
      // Predicated region
      $region65: #{actor_critic_forward.1} parent=63 // pred_check
        %p2584 = pneg %p238
      $region66: #{actor_critic_forward.1} parent=63 // pred_check_branch
        %2586 = sbr.rel (%p2584) target = $region68
      $region67: #{actor_critic_forward.1} parent=63 // pred_region
        %s2587 = smul.u32 2, %s21
        %p2588 = scmp.lt.s32.totalorder %s2587, 3
        %s2589 = scalar_select %p2588, %s2587, 3
        %s2590 = smul.addr %s2589, 8
        %s2591 = scalar_lea.vmem %s9, %s2590
      $region68: #{actor_critic_forward.1} parent=63 // pred_fallthru
        _
    $region64: #{actor_critic_forward.1} parent=5 // pred_fallthru
      _
  $region6: #{actor_critic_forward.1} parent=0 // loop_footer
    %s19 = sadd.s32 1, %s15
  $region7: #{actor_critic_forward.1} parent=0 // loop_footer_branch
    %14 = sbr.rel target = $region3
  $region8: #{actor_critic_forward.1} parent=0 // loop_exit
    _

</llo_original>
